<compile_context>
chip_gen: v5e
topology: v5e:2x2
jax: 0.10.0
libtpu: 0.0.40
codegen_flags: <defaults>
</compile_context>

<pallas_src>
import numpy as np

import jax
import jax.numpy as jnp
from jax import lax
from jax.experimental import pallas as pl
from jax.experimental.pallas import tpu as pltpu  # noqa: F401  (TPU backend)

IMAGE_CHANNELS = 4
K1, S1 = 8, 4            # conv1: Conv2d(4, 16, 8, stride=4)
K2, S2 = 4, 2            # conv2: Conv2d(16, 32, 4, stride=2)
C1_OUT, C2_OUT = 16, 32
FC1_OUT = 256
LANES = 128              # TPU lane width; pad every matmul N dim to this


def _round_up(v, m):
    return ((v + m - 1) // m) * m


# ----------------------------------------------------------------------------
# The fused Pallas kernel: whole forward pass, all activations VMEM-resident.
# ----------------------------------------------------------------------------
def _fused_forward_kernel(p1_ref, w1_ref, b1_ref, sel_ref, w2_ref, b2_ref,
                          rsel_ref, w3_ref, b3_ref, w4_ref, b4_ref, o_ref):
    n_taps = w2_ref.shape[0]        # 16 = 4x4 conv2 kernel taps (ki,kj)
    n_rows2 = sel_ref.shape[1]      # batch * oh2 * ow2 (= 8)
    n_sp2 = rsel_ref.shape[0]       # oh2 * ow2 (= 4)
    batch = rsel_ref.shape[1]

    # conv1 as an im2col matmul (+bias, ReLU); lanes = out channels (16 real of 128)
    h0 = jnp.dot(p1_ref[...], w1_ref[...], preferred_element_type=jnp.float32)
    h0 = jnp.maximum(h0 + b1_ref[...], 0.0)                       # (128, 128)

    # conv2: per-tap row gather (constant selection matmul) + per-tap weight matmul
    acc2 = jnp.zeros((n_rows2, w2_ref.shape[2]), jnp.float32)     # (8, 128)
    for t in range(n_taps):
        g_t = jnp.dot(sel_ref[t], h0, preferred_element_type=jnp.float32)
        acc2 = acc2 + jnp.dot(g_t, w2_ref[t], preferred_element_type=jnp.float32)
    h1 = jnp.maximum(acc2 + b2_ref[...], 0.0)                     # rows = (spatial, batch)

    # flatten + fc1 (+ReLU): per conv2 spatial position, pick its `batch` rows with a
    # tiny selection matmul and multiply by that position's slice of the fc1 weight
    h3 = jnp.zeros((batch, w3_ref.shape[2]), jnp.float32)         # (B, 256)
    for s in range(n_sp2):
        rows_s = jnp.dot(rsel_ref[s], h1, preferred_element_type=jnp.float32)
        h3 = h3 + jnp.dot(rows_s, w3_ref[s], preferred_element_type=jnp.float32)
    h3 = jnp.maximum(h3 + b3_ref[...], 0.0)                       # (B, 256)

    # fused actor (lane 0, sigmoid) + critic (lane 1, linear) heads
    y = jnp.dot(h3, w4_ref[...], preferred_element_type=jnp.float32) + b4_ref[...]
    sig = pl.reciprocal(1.0 + jnp.exp(-y), approx=True)           # EUP exp + rcp
    lane = lax.broadcasted_iota(jnp.int32, y.shape, 1)
    o_ref[...] = jnp.where(lane == 0, sig, y)                     # (B, 128), lane-dense


# ----------------------------------------------------------------------------
# One-time weight repacking (outside jit): pad to 128 lanes, build the constant
# selection matrices that implement conv2's im2col and the NCHW flatten.
# ----------------------------------------------------------------------------
def prepare_params(params, batch, height, width):
    oh1 = (height - K1) // S1 + 1
    ow1 = (width - K1) // S1 + 1
    oh2 = (oh1 - K2) // S2 + 1
    ow2 = (ow1 - K2) // S2 + 1
    n_sp2 = oh2 * ow2                        # conv2 output spatial positions (4)
    n_rows2 = batch * n_sp2                  # conv2 im2col rows (8)
    m1 = batch * oh1 * ow1                   # conv1 im2col rows (98)
    m1p = _round_up(m1, LANES)               # padded to 128
    k1_flat = IMAGE_CHANNELS * K1 * K1       # 256

    # conv1 weight -> (256, 16) channel-major patch matmul, pad lanes to 128
    w1 = params["conv1_w"].reshape(C1_OUT, k1_flat).T
    w1 = jnp.pad(w1, ((0, 0), (0, LANES - C1_OUT)))
    b1 = jnp.pad(params["conv1_b"], (0, LANES - C1_OUT)).reshape(1, LANES)

    # identity kernel used to extract conv1 patches (pure data movement, no FLOPs)
    im2col_w = jnp.eye(k1_flat, dtype=jnp.float32).reshape(
        k1_flat, IMAGE_CHANNELS, K1, K1)

    # conv2 weights per tap: w2[t, c, oc] = conv2_w[oc, c, ki, kj]; pad to (16,128,128)
    w2 = params["conv2_w"].transpose(2, 3, 1, 0).reshape(K2 * K2, C1_OUT, C2_OUT)
    w2 = jnp.pad(w2, ((0, 0), (0, LANES - C1_OUT), (0, LANES - C2_OUT)))
    b2 = jnp.pad(params["conv2_b"], (0, LANES - C2_OUT)).reshape(1, LANES)

    # selection tensor: sel[t, m, r] = 1 picks the h0 row feeding conv2 tap t at
    # output position m (rows ordered spatial-major, batch-minor: m = s*batch + b)
    sel = np.zeros((K2 * K2, n_rows2, m1p), np.float32)
    for ki in range(K2):
        for kj in range(K2):
            t = ki * K2 + kj
            for o2h in range(oh2):
                for o2w in range(ow2):
                    for b in range(batch):
                        m = (o2h * ow2 + o2w) * batch + b
                        r = b * (oh1 * ow1) + (S2 * o2h + ki) * ow1 + (S2 * o2w + kj)
                        sel[t, m, r] = 1.0
    sel = jnp.asarray(sel)

    # row selection for flatten/fc1: rsel[s, b, m] = 1 iff m == s*batch + b
    rsel = np.zeros((n_sp2, batch, n_rows2), np.float32)
    for s in range(n_sp2):
        for b in range(batch):
            rsel[s, b, s * batch + b] = 1.0
    rsel = jnp.asarray(rsel)

    # fc1 weight split per spatial position: w3[s, oc, n] = fc1_w[n, oc*n_sp2 + s]
    w3 = params["fc1_w"].reshape(FC1_OUT, C2_OUT, n_sp2).transpose(2, 1, 0)
    w3 = jnp.pad(w3, ((0, 0), (0, LANES - C2_OUT), (0, 0)))       # (4, 128, 256)
    b3 = params["fc1_b"].reshape(1, FC1_OUT)

    # fused actor/critic head: column 0 = actor, column 1 = critic, rest zero
    w4 = jnp.zeros((FC1_OUT, LANES), jnp.float32)
    w4 = w4.at[:, 0].set(params["actor_w"][0]).at[:, 1].set(params["critic_w"][0])
    b4 = jnp.zeros((1, LANES), jnp.float32)
    b4 = b4.at[0, 0].set(params["actor_b"][0]).at[0, 1].set(params["critic_b"][0])

    return {"im2col_w": im2col_w, "w1": w1, "b1": b1, "sel": sel, "w2": w2,
            "b2": b2, "rsel": rsel, "w3": w3, "b3": b3, "w4": w4, "b4": b4}


# ----------------------------------------------------------------------------
# Forward pass (mirrors ActorCritic.forward)
# ----------------------------------------------------------------------------
@jax.jit
def actor_critic_forward(x, prep):
    batch, _, height, width = x.shape
    oh1 = (height - K1) // S1 + 1
    ow1 = (width - K1) // S1 + 1
    m1 = batch * oh1 * ow1
    m1p = prep["sel"].shape[2]

    # conv1 im2col via identity-kernel conv (channel-major patches, rows (b,oh,ow))
    p = lax.conv_general_dilated(
        x, prep["im2col_w"], (S1, S1), "VALID",
        dimension_numbers=("NCHW", "OIHW", "NCHW"),
        precision=lax.Precision.HIGHEST)                  # (B, 256, 7, 7)
    p = p.transpose(0, 2, 3, 1).reshape(m1, -1)           # (98, 256)
    p = jnp.pad(p, ((0, m1p - m1), (0, 0)))               # (128, 256) sublane-aligned

    out = pl.pallas_call(
        _fused_forward_kernel,
        out_shape=jax.ShapeDtypeStruct((batch, LANES), jnp.float32),
    )(p, prep["w1"], prep["b1"], prep["sel"], prep["w2"], prep["b2"],
      prep["rsel"], prep["w3"], prep["b3"], prep["w4"], prep["b4"])

    return out[:, 0:1], out[:, 1:2]                       # (sigmoid(actor), critic)


# ----------------------------------------------------------------------------
# Pure-JAX reference of the PyTorch module (for in-script validation)
# ----------------------------------------------------------------------------
def reference_forward(x, params):
    dn = ("NCHW", "OIHW", "NCHW")
    h0 = jax.nn.relu(lax.conv_general_dilated(
        x, params["conv1_w"], (S1, S1), "VALID", dimension_numbers=dn,
        precision=lax.Precision.HIGHEST) + params["conv1_b"][None, :, None, None])
    h1 = jax.nn.relu(lax.conv_general_dilated(
        h0, params["conv2_w"], (S2, S2), "VALID", dimension_numbers=dn,
        precision=lax.Precision.HIGHEST) + params["conv2_b"][None, :, None, None])
    h2 = h1.reshape(h1.shape[0], -1)
    h3 = jax.nn.relu(h2 @ params["fc1_w"].T + params["fc1_b"])
    a = h3 @ params["actor_w"].T + params["actor_b"]
    c = h3 @ params["critic_w"].T + params["critic_b"]
    return jax.nn.sigmoid(a), c


# ----------------------------------------------------------------------------
# Deterministic parameter init (PyTorch-style U(-1/sqrt(fan_in), 1/sqrt(fan_in)))
# ----------------------------------------------------------------------------
def init_params(key, flat_features):
    def uniform(k, shape, fan_in):
        bound = 1.0 / jnp.sqrt(jnp.float32(fan_in))
        return jax.random.uniform(k, shape, jnp.float32, -bound, bound)

    ks = jax.random.split(key, 10)
    return {
        "conv1_w": uniform(ks[0], (C1_OUT, IMAGE_CHANNELS, K1, K1), IMAGE_CHANNELS * K1 * K1),
        "conv1_b": uniform(ks[1], (C1_OUT,), IMAGE_CHANNELS * K1 * K1),
        "conv2_w": uniform(ks[2], (C2_OUT, C1_OUT, K2, K2), C1_OUT * K2 * K2),
        "conv2_b": uniform(ks[3], (C2_OUT,), C1_OUT * K2 * K2),
        "fc1_w": uniform(ks[4], (FC1_OUT, flat_features), flat_features),
        "fc1_b": uniform(ks[5], (FC1_OUT,), flat_features),
        "actor_w": uniform(ks[6], (1, FC1_OUT), FC1_OUT),
        "actor_b": uniform(ks[7], (1,), FC1_OUT),
        "critic_w": uniform(ks[8], (1, FC1_OUT), FC1_OUT),
        "critic_b": uniform(ks[9], (1,), FC1_OUT),
    }


if __name__ == "__main__":
    # Small shapes consistent with the module: NCHW, 4 channels, 32x32 image.
    B, C, H, W = 2, IMAGE_CHANNELS, 32, 32
    oh1 = (H - K1) // S1 + 1          # 7
    oh2 = (oh1 - K2) // S2 + 1        # 2
    flat_features = C2_OUT * oh2 * oh2  # 128 (what LazyLinear(256) would see)

    key = jax.random.PRNGKey(0)
    k_x, k_p = jax.random.split(key)
    x = jax.random.normal(k_x, (B, C, H, W), jnp.float32)
    params = init_params(k_p, flat_features)

    prep = prepare_params(params, B, H, W)    # one-time weight repack (outside jit)
    out1, c1 = actor_critic_forward(x, prep)
    jax.block_until_ready((out1, c1))

    # Validate against a pure-JAX reference of the PyTorch module.
    ref1, refc = reference_forward(x, params)
    assert out1.shape == (B, 1) and c1.shape == (B, 1)
    assert bool(jnp.all((out1 >= 0.0) & (out1 <= 1.0)))
    assert bool(jnp.allclose(out1, ref1, atol=2e-2, rtol=2e-2))
    assert bool(jnp.allclose(c1, refc, atol=2e-2, rtol=2e-2))
    print("KERNEL_OK")
</pallas_src>

<mosaic_0001>
module attributes {stable_mosaic.version = 11 : i64} {
  func.func @_fused_forward_kernel(%arg0: memref<128x256xf32, #tpu.memory_space<vmem>>, %arg1: memref<256x128xf32, #tpu.memory_space<vmem>>, %arg2: memref<1x128xf32, #tpu.memory_space<vmem>>, %arg3: memref<16x8x128xf32, #tpu.memory_space<vmem>>, %arg4: memref<16x128x128xf32, #tpu.memory_space<vmem>>, %arg5: memref<1x128xf32, #tpu.memory_space<vmem>>, %arg6: memref<4x2x8xf32, #tpu.memory_space<vmem>>, %arg7: memref<4x128x256xf32, #tpu.memory_space<vmem>>, %arg8: memref<1x256xf32, #tpu.memory_space<vmem>>, %arg9: memref<256x128xf32, #tpu.memory_space<vmem>>, %arg10: memref<1x128xf32, #tpu.memory_space<vmem>>, %arg11: memref<2x128xf32, #tpu.memory_space<vmem>>) attributes {dimension_semantics = [], scalar_prefetch = 0 : i64, scratch_operands = 0 : i64, tpu.core_type = #tpu.core_type<tc>} {
    %c0 = arith.constant 0 : index
    %c0_0 = arith.constant 0 : index
    %0 = vector.load %arg0[%c0, %c0_0] : memref<128x256xf32, #tpu.memory_space<vmem>>, vector<128x256xf32>
    %c0_1 = arith.constant 0 : index
    %c0_2 = arith.constant 0 : index
    %1 = vector.load %arg1[%c0_1, %c0_2] : memref<256x128xf32, #tpu.memory_space<vmem>>, vector<256x128xf32>
    %cst = arith.constant dense<0.000000e+00> : vector<128x128xf32>
    %2 = tpu.matmul %0, %1, %cst {dimension_numbers = #tpu.dot_dimension_numbers<[1], [0], [0], [1], [0, 0, 1, 1], [], []>} : vector<128x256xf32>, vector<256x128xf32>, vector<128x128xf32> -> vector<128x128xf32>
    %c0_3 = arith.constant 0 : index
    %c0_4 = arith.constant 0 : index
    %3 = vector.load %arg2[%c0_3, %c0_4] : memref<1x128xf32, #tpu.memory_space<vmem>>, vector<1x128xf32>
    %4 = vector.broadcast %3 : vector<1x128xf32> to vector<128x128xf32>
    %5 = arith.addf %2, %4 : vector<128x128xf32>
    %cst_5 = arith.constant 0.000000e+00 : f32
    %6 = vector.broadcast %cst_5 : f32 to vector<128x128xf32>
    %7 = arith.maximumf %5, %6 : vector<128x128xf32>
    %cst_6 = arith.constant 0.000000e+00 : f32
    %8 = vector.broadcast %cst_6 : f32 to vector<8x128xf32>
    %c0_7 = arith.constant 0 : index
    %c0_8 = arith.constant 0 : index
    %c0_9 = arith.constant 0 : index
    %9 = vector.load %arg3[%c0_7, %c0_8, %c0_9] : memref<16x8x128xf32, #tpu.memory_space<vmem>>, vector<1x8x128xf32>
    %10 = vector.shape_cast %9 : vector<1x8x128xf32> to vector<8x128xf32>
    %cst_10 = arith.constant dense<0.000000e+00> : vector<8x128xf32>
    %11 = tpu.matmul %10, %7, %cst_10 {dimension_numbers = #tpu.dot_dimension_numbers<[1], [0], [0], [1], [0, 0, 1, 1], [], []>} : vector<8x128xf32>, vector<128x128xf32>, vector<8x128xf32> -> vector<8x128xf32>
    %c0_11 = arith.constant 0 : index
    %c0_12 = arith.constant 0 : index
    %c0_13 = arith.constant 0 : index
    %12 = vector.load %arg4[%c0_11, %c0_12, %c0_13] : memref<16x128x128xf32, #tpu.memory_space<vmem>>, vector<1x128x128xf32>
    %13 = vector.shape_cast %12 : vector<1x128x128xf32> to vector<128x128xf32>
    %cst_14 = arith.constant dense<0.000000e+00> : vector<8x128xf32>
    %14 = tpu.matmul %11, %13, %cst_14 {dimension_numbers = #tpu.dot_dimension_numbers<[1], [0], [0], [1], [0, 0, 1, 1], [], []>} : vector<8x128xf32>, vector<128x128xf32>, vector<8x128xf32> -> vector<8x128xf32>
    %15 = arith.addf %8, %14 : vector<8x128xf32>
    %c1 = arith.constant 1 : index
    %c0_15 = arith.constant 0 : index
    %c0_16 = arith.constant 0 : index
    %16 = vector.load %arg3[%c1, %c0_15, %c0_16] : memref<16x8x128xf32, #tpu.memory_space<vmem>>, vector<1x8x128xf32>
    %17 = vector.shape_cast %16 : vector<1x8x128xf32> to vector<8x128xf32>
    %cst_17 = arith.constant dense<0.000000e+00> : vector<8x128xf32>
    %18 = tpu.matmul %17, %7, %cst_17 {dimension_numbers = #tpu.dot_dimension_numbers<[1], [0], [0], [1], [0, 0, 1, 1], [], []>} : vector<8x128xf32>, vector<128x128xf32>, vector<8x128xf32> -> vector<8x128xf32>
    %c1_18 = arith.constant 1 : index
    %c0_19 = arith.constant 0 : index
    %c0_20 = arith.constant 0 : index
    %19 = vector.load %arg4[%c1_18, %c0_19, %c0_20] : memref<16x128x128xf32, #tpu.memory_space<vmem>>, vector<1x128x128xf32>
    %20 = vector.shape_cast %19 : vector<1x128x128xf32> to vector<128x128xf32>
    %cst_21 = arith.constant dense<0.000000e+00> : vector<8x128xf32>
    %21 = tpu.matmul %18, %20, %cst_21 {dimension_numbers = #tpu.dot_dimension_numbers<[1], [0], [0], [1], [0, 0, 1, 1], [], []>} : vector<8x128xf32>, vector<128x128xf32>, vector<8x128xf32> -> vector<8x128xf32>
    %22 = arith.addf %15, %21 : vector<8x128xf32>
    %c2 = arith.constant 2 : index
    %c0_22 = arith.constant 0 : index
    %c0_23 = arith.constant 0 : index
    %23 = vector.load %arg3[%c2, %c0_22, %c0_23] : memref<16x8x128xf32, #tpu.memory_space<vmem>>, vector<1x8x128xf32>
    %24 = vector.shape_cast %23 : vector<1x8x128xf32> to vector<8x128xf32>
    %cst_24 = arith.constant dense<0.000000e+00> : vector<8x128xf32>
    %25 = tpu.matmul %24, %7, %cst_24 {dimension_numbers = #tpu.dot_dimension_numbers<[1], [0], [0], [1], [0, 0, 1, 1], [], []>} : vector<8x128xf32>, vector<128x128xf32>, vector<8x128xf32> -> vector<8x128xf32>
    %c2_25 = arith.constant 2 : index
    %c0_26 = arith.constant 0 : index
    %c0_27 = arith.constant 0 : index
    %26 = vector.load %arg4[%c2_25, %c0_26, %c0_27] : memref<16x128x128xf32, #tpu.memory_space<vmem>>, vector<1x128x128xf32>
    %27 = vector.shape_cast %26 : vector<1x128x128xf32> to vector<128x128xf32>
    %cst_28 = arith.constant dense<0.000000e+00> : vector<8x128xf32>
    %28 = tpu.matmul %25, %27, %cst_28 {dimension_numbers = #tpu.dot_dimension_numbers<[1], [0], [0], [1], [0, 0, 1, 1], [], []>} : vector<8x128xf32>, vector<128x128xf32>, vector<8x128xf32> -> vector<8x128xf32>
    %29 = arith.addf %22, %28 : vector<8x128xf32>
    %c3 = arith.constant 3 : index
    %c0_29 = arith.constant 0 : index
    %c0_30 = arith.constant 0 : index
    %30 = vector.load %arg3[%c3, %c0_29, %c0_30] : memref<16x8x128xf32, #tpu.memory_space<vmem>>, vector<1x8x128xf32>
    %31 = vector.shape_cast %30 : vector<1x8x128xf32> to vector<8x128xf32>
    %cst_31 = arith.constant dense<0.000000e+00> : vector<8x128xf32>
    %32 = tpu.matmul %31, %7, %cst_31 {dimension_numbers = #tpu.dot_dimension_numbers<[1], [0], [0], [1], [0, 0, 1, 1], [], []>} : vector<8x128xf32>, vector<128x128xf32>, vector<8x128xf32> -> vector<8x128xf32>
    %c3_32 = arith.constant 3 : index
    %c0_33 = arith.constant 0 : index
    %c0_34 = arith.constant 0 : index
    %33 = vector.load %arg4[%c3_32, %c0_33, %c0_34] : memref<16x128x128xf32, #tpu.memory_space<vmem>>, vector<1x128x128xf32>
    %34 = vector.shape_cast %33 : vector<1x128x128xf32> to vector<128x128xf32>
    %cst_35 = arith.constant dense<0.000000e+00> : vector<8x128xf32>
    %35 = tpu.matmul %32, %34, %cst_35 {dimension_numbers = #tpu.dot_dimension_numbers<[1], [0], [0], [1], [0, 0, 1, 1], [], []>} : vector<8x128xf32>, vector<128x128xf32>, vector<8x128xf32> -> vector<8x128xf32>
    %36 = arith.addf %29, %35 : vector<8x128xf32>
    %c4 = arith.constant 4 : index
    %c0_36 = arith.constant 0 : index
    %c0_37 = arith.constant 0 : index
    %37 = vector.load %arg3[%c4, %c0_36, %c0_37] : memref<16x8x128xf32, #tpu.memory_space<vmem>>, vector<1x8x128xf32>
    %38 = vector.shape_cast %37 : vector<1x8x128xf32> to vector<8x128xf32>
    %cst_38 = arith.constant dense<0.000000e+00> : vector<8x128xf32>
    %39 = tpu.matmul %38, %7, %cst_38 {dimension_numbers = #tpu.dot_dimension_numbers<[1], [0], [0], [1], [0, 0, 1, 1], [], []>} : vector<8x128xf32>, vector<128x128xf32>, vector<8x128xf32> -> vector<8x128xf32>
    %c4_39 = arith.constant 4 : index
    %c0_40 = arith.constant 0 : index
    %c0_41 = arith.constant 0 : index
    %40 = vector.load %arg4[%c4_39, %c0_40, %c0_41] : memref<16x128x128xf32, #tpu.memory_space<vmem>>, vector<1x128x128xf32>
    %41 = vector.shape_cast %40 : vector<1x128x128xf32> to vector<128x128xf32>
    %cst_42 = arith.constant dense<0.000000e+00> : vector<8x128xf32>
    %42 = tpu.matmul %39, %41, %cst_42 {dimension_numbers = #tpu.dot_dimension_numbers<[1], [0], [0], [1], [0, 0, 1, 1], [], []>} : vector<8x128xf32>, vector<128x128xf32>, vector<8x128xf32> -> vector<8x128xf32>
    %43 = arith.addf %36, %42 : vector<8x128xf32>
    %c5 = arith.constant 5 : index
    %c0_43 = arith.constant 0 : index
    %c0_44 = arith.constant 0 : index
    %44 = vector.load %arg3[%c5, %c0_43, %c0_44] : memref<16x8x128xf32, #tpu.memory_space<vmem>>, vector<1x8x128xf32>
    %45 = vector.shape_cast %44 : vector<1x8x128xf32> to vector<8x128xf32>
    %cst_45 = arith.constant dense<0.000000e+00> : vector<8x128xf32>
    %46 = tpu.matmul %45, %7, %cst_45 {dimension_numbers = #tpu.dot_dimension_numbers<[1], [0], [0], [1], [0, 0, 1, 1], [], []>} : vector<8x128xf32>, vector<128x128xf32>, vector<8x128xf32> -> vector<8x128xf32>
    %c5_46 = arith.constant 5 : index
    %c0_47 = arith.constant 0 : index
    %c0_48 = arith.constant 0 : index
    %47 = vector.load %arg4[%c5_46, %c0_47, %c0_48] : memref<16x128x128xf32, #tpu.memory_space<vmem>>, vector<1x128x128xf32>
    %48 = vector.shape_cast %47 : vector<1x128x128xf32> to vector<128x128xf32>
    %cst_49 = arith.constant dense<0.000000e+00> : vector<8x128xf32>
    %49 = tpu.matmul %46, %48, %cst_49 {dimension_numbers = #tpu.dot_dimension_numbers<[1], [0], [0], [1], [0, 0, 1, 1], [], []>} : vector<8x128xf32>, vector<128x128xf32>, vector<8x128xf32> -> vector<8x128xf32>
    %50 = arith.addf %43, %49 : vector<8x128xf32>
    %c6 = arith.constant 6 : index
    %c0_50 = arith.constant 0 : index
    %c0_51 = arith.constant 0 : index
    %51 = vector.load %arg3[%c6, %c0_50, %c0_51] : memref<16x8x128xf32, #tpu.memory_space<vmem>>, vector<1x8x128xf32>
    %52 = vector.shape_cast %51 : vector<1x8x128xf32> to vector<8x128xf32>
    %cst_52 = arith.constant dense<0.000000e+00> : vector<8x128xf32>
    %53 = tpu.matmul %52, %7, %cst_52 {dimension_numbers = #tpu.dot_dimension_numbers<[1], [0], [0], [1], [0, 0, 1, 1], [], []>} : vector<8x128xf32>, vector<128x128xf32>, vector<8x128xf32> -> vector<8x128xf32>
    %c6_53 = arith.constant 6 : index
    %c0_54 = arith.constant 0 : index
    %c0_55 = arith.constant 0 : index
    %54 = vector.load %arg4[%c6_53, %c0_54, %c0_55] : memref<16x128x128xf32, #tpu.memory_space<vmem>>, vector<1x128x128xf32>
    %55 = vector.shape_cast %54 : vector<1x128x128xf32> to vector<128x128xf32>
    %cst_56 = arith.constant dense<0.000000e+00> : vector<8x128xf32>
    %56 = tpu.matmul %53, %55, %cst_56 {dimension_numbers = #tpu.dot_dimension_numbers<[1], [0], [0], [1], [0, 0, 1, 1], [], []>} : vector<8x128xf32>, vector<128x128xf32>, vector<8x128xf32> -> vector<8x128xf32>
    %57 = arith.addf %50, %56 : vector<8x128xf32>
    %c7 = arith.constant 7 : index
    %c0_57 = arith.constant 0 : index
    %c0_58 = arith.constant 0 : index
    %58 = vector.load %arg3[%c7, %c0_57, %c0_58] : memref<16x8x128xf32, #tpu.memory_space<vmem>>, vector<1x8x128xf32>
    %59 = vector.shape_cast %58 : vector<1x8x128xf32> to vector<8x128xf32>
    %cst_59 = arith.constant dense<0.000000e+00> : vector<8x128xf32>
    %60 = tpu.matmul %59, %7, %cst_59 {dimension_numbers = #tpu.dot_dimension_numbers<[1], [0], [0], [1], [0, 0, 1, 1], [], []>} : vector<8x128xf32>, vector<128x128xf32>, vector<8x128xf32> -> vector<8x128xf32>
    %c7_60 = arith.constant 7 : index
    %c0_61 = arith.constant 0 : index
    %c0_62 = arith.constant 0 : index
    %61 = vector.load %arg4[%c7_60, %c0_61, %c0_62] : memref<16x128x128xf32, #tpu.memory_space<vmem>>, vector<1x128x128xf32>
    %62 = vector.shape_cast %61 : vector<1x128x128xf32> to vector<128x128xf32>
    %cst_63 = arith.constant dense<0.000000e+00> : vector<8x128xf32>
    %63 = tpu.matmul %60, %62, %cst_63 {dimension_numbers = #tpu.dot_dimension_numbers<[1], [0], [0], [1], [0, 0, 1, 1], [], []>} : vector<8x128xf32>, vector<128x128xf32>, vector<8x128xf32> -> vector<8x128xf32>
    %64 = arith.addf %57, %63 : vector<8x128xf32>
    %c8 = arith.constant 8 : index
    %c0_64 = arith.constant 0 : index
    %c0_65 = arith.constant 0 : index
    %65 = vector.load %arg3[%c8, %c0_64, %c0_65] : memref<16x8x128xf32, #tpu.memory_space<vmem>>, vector<1x8x128xf32>
    %66 = vector.shape_cast %65 : vector<1x8x128xf32> to vector<8x128xf32>
    %cst_66 = arith.constant dense<0.000000e+00> : vector<8x128xf32>
    %67 = tpu.matmul %66, %7, %cst_66 {dimension_numbers = #tpu.dot_dimension_numbers<[1], [0], [0], [1], [0, 0, 1, 1], [], []>} : vector<8x128xf32>, vector<128x128xf32>, vector<8x128xf32> -> vector<8x128xf32>
    %c8_67 = arith.constant 8 : index
    %c0_68 = arith.constant 0 : index
    %c0_69 = arith.constant 0 : index
    %68 = vector.load %arg4[%c8_67, %c0_68, %c0_69] : memref<16x128x128xf32, #tpu.memory_space<vmem>>, vector<1x128x128xf32>
    %69 = vector.shape_cast %68 : vector<1x128x128xf32> to vector<128x128xf32>
    %cst_70 = arith.constant dense<0.000000e+00> : vector<8x128xf32>
    %70 = tpu.matmul %67, %69, %cst_70 {dimension_numbers = #tpu.dot_dimension_numbers<[1], [0], [0], [1], [0, 0, 1, 1], [], []>} : vector<8x128xf32>, vector<128x128xf32>, vector<8x128xf32> -> vector<8x128xf32>
    %71 = arith.addf %64, %70 : vector<8x128xf32>
    %c9 = arith.constant 9 : index
    %c0_71 = arith.constant 0 : index
    %c0_72 = arith.constant 0 : index
    %72 = vector.load %arg3[%c9, %c0_71, %c0_72] : memref<16x8x128xf32, #tpu.memory_space<vmem>>, vector<1x8x128xf32>
    %73 = vector.shape_cast %72 : vector<1x8x128xf32> to vector<8x128xf32>
    %cst_73 = arith.constant dense<0.000000e+00> : vector<8x128xf32>
    %74 = tpu.matmul %73, %7, %cst_73 {dimension_numbers = #tpu.dot_dimension_numbers<[1], [0], [0], [1], [0, 0, 1, 1], [], []>} : vector<8x128xf32>, vector<128x128xf32>, vector<8x128xf32> -> vector<8x128xf32>
    %c9_74 = arith.constant 9 : index
    %c0_75 = arith.constant 0 : index
    %c0_76 = arith.constant 0 : index
    %75 = vector.load %arg4[%c9_74, %c0_75, %c0_76] : memref<16x128x128xf32, #tpu.memory_space<vmem>>, vector<1x128x128xf32>
    %76 = vector.shape_cast %75 : vector<1x128x128xf32> to vector<128x128xf32>
    %cst_77 = arith.constant dense<0.000000e+00> : vector<8x128xf32>
    %77 = tpu.matmul %74, %76, %cst_77 {dimension_numbers = #tpu.dot_dimension_numbers<[1], [0], [0], [1], [0, 0, 1, 1], [], []>} : vector<8x128xf32>, vector<128x128xf32>, vector<8x128xf32> -> vector<8x128xf32>
    %78 = arith.addf %71, %77 : vector<8x128xf32>
    %c10 = arith.constant 10 : index
    %c0_78 = arith.constant 0 : index
    %c0_79 = arith.constant 0 : index
    %79 = vector.load %arg3[%c10, %c0_78, %c0_79] : memref<16x8x128xf32, #tpu.memory_space<vmem>>, vector<1x8x128xf32>
    %80 = vector.shape_cast %79 : vector<1x8x128xf32> to vector<8x128xf32>
    %cst_80 = arith.constant dense<0.000000e+00> : vector<8x128xf32>
    %81 = tpu.matmul %80, %7, %cst_80 {dimension_numbers = #tpu.dot_dimension_numbers<[1], [0], [0], [1], [0, 0, 1, 1], [], []>} : vector<8x128xf32>, vector<128x128xf32>, vector<8x128xf32> -> vector<8x128xf32>
    %c10_81 = arith.constant 10 : index
    %c0_82 = arith.constant 0 : index
    %c0_83 = arith.constant 0 : index
    %82 = vector.load %arg4[%c10_81, %c0_82, %c0_83] : memref<16x128x128xf32, #tpu.memory_space<vmem>>, vector<1x128x128xf32>
    %83 = vector.shape_cast %82 : vector<1x128x128xf32> to vector<128x128xf32>
    %cst_84 = arith.constant dense<0.000000e+00> : vector<8x128xf32>
    %84 = tpu.matmul %81, %83, %cst_84 {dimension_numbers = #tpu.dot_dimension_numbers<[1], [0], [0], [1], [0, 0, 1, 1], [], []>} : vector<8x128xf32>, vector<128x128xf32>, vector<8x128xf32> -> vector<8x128xf32>
    %85 = arith.addf %78, %84 : vector<8x128xf32>
    %c11 = arith.constant 11 : index
    %c0_85 = arith.constant 0 : index
    %c0_86 = arith.constant 0 : index
    %86 = vector.load %arg3[%c11, %c0_85, %c0_86] : memref<16x8x128xf32, #tpu.memory_space<vmem>>, vector<1x8x128xf32>
    %87 = vector.shape_cast %86 : vector<1x8x128xf32> to vector<8x128xf32>
    %cst_87 = arith.constant dense<0.000000e+00> : vector<8x128xf32>
    %88 = tpu.matmul %87, %7, %cst_87 {dimension_numbers = #tpu.dot_dimension_numbers<[1], [0], [0], [1], [0, 0, 1, 1], [], []>} : vector<8x128xf32>, vector<128x128xf32>, vector<8x128xf32> -> vector<8x128xf32>
    %c11_88 = arith.constant 11 : index
    %c0_89 = arith.constant 0 : index
    %c0_90 = arith.constant 0 : index
    %89 = vector.load %arg4[%c11_88, %c0_89, %c0_90] : memref<16x128x128xf32, #tpu.memory_space<vmem>>, vector<1x128x128xf32>
    %90 = vector.shape_cast %89 : vector<1x128x128xf32> to vector<128x128xf32>
    %cst_91 = arith.constant dense<0.000000e+00> : vector<8x128xf32>
    %91 = tpu.matmul %88, %90, %cst_91 {dimension_numbers = #tpu.dot_dimension_numbers<[1], [0], [0], [1], [0, 0, 1, 1], [], []>} : vector<8x128xf32>, vector<128x128xf32>, vector<8x128xf32> -> vector<8x128xf32>
    %92 = arith.addf %85, %91 : vector<8x128xf32>
    %c12 = arith.constant 12 : index
    %c0_92 = arith.constant 0 : index
    %c0_93 = arith.constant 0 : index
    %93 = vector.load %arg3[%c12, %c0_92, %c0_93] : memref<16x8x128xf32, #tpu.memory_space<vmem>>, vector<1x8x128xf32>
    %94 = vector.shape_cast %93 : vector<1x8x128xf32> to vector<8x128xf32>
    %cst_94 = arith.constant dense<0.000000e+00> : vector<8x128xf32>
    %95 = tpu.matmul %94, %7, %cst_94 {dimension_numbers = #tpu.dot_dimension_numbers<[1], [0], [0], [1], [0, 0, 1, 1], [], []>} : vector<8x128xf32>, vector<128x128xf32>, vector<8x128xf32> -> vector<8x128xf32>
    %c12_95 = arith.constant 12 : index
    %c0_96 = arith.constant 0 : index
    %c0_97 = arith.constant 0 : index
    %96 = vector.load %arg4[%c12_95, %c0_96, %c0_97] : memref<16x128x128xf32, #tpu.memory_space<vmem>>, vector<1x128x128xf32>
    %97 = vector.shape_cast %96 : vector<1x128x128xf32> to vector<128x128xf32>
    %cst_98 = arith.constant dense<0.000000e+00> : vector<8x128xf32>
    %98 = tpu.matmul %95, %97, %cst_98 {dimension_numbers = #tpu.dot_dimension_numbers<[1], [0], [0], [1], [0, 0, 1, 1], [], []>} : vector<8x128xf32>, vector<128x128xf32>, vector<8x128xf32> -> vector<8x128xf32>
    %99 = arith.addf %92, %98 : vector<8x128xf32>
    %c13 = arith.constant 13 : index
    %c0_99 = arith.constant 0 : index
    %c0_100 = arith.constant 0 : index
    %100 = vector.load %arg3[%c13, %c0_99, %c0_100] : memref<16x8x128xf32, #tpu.memory_space<vmem>>, vector<1x8x128xf32>
    %101 = vector.shape_cast %100 : vector<1x8x128xf32> to vector<8x128xf32>
    %cst_101 = arith.constant dense<0.000000e+00> : vector<8x128xf32>
    %102 = tpu.matmul %101, %7, %cst_101 {dimension_numbers = #tpu.dot_dimension_numbers<[1], [0], [0], [1], [0, 0, 1, 1], [], []>} : vector<8x128xf32>, vector<128x128xf32>, vector<8x128xf32> -> vector<8x128xf32>
    %c13_102 = arith.constant 13 : index
    %c0_103 = arith.constant 0 : index
    %c0_104 = arith.constant 0 : index
    %103 = vector.load %arg4[%c13_102, %c0_103, %c0_104] : memref<16x128x128xf32, #tpu.memory_space<vmem>>, vector<1x128x128xf32>
    %104 = vector.shape_cast %103 : vector<1x128x128xf32> to vector<128x128xf32>
    %cst_105 = arith.constant dense<0.000000e+00> : vector<8x128xf32>
    %105 = tpu.matmul %102, %104, %cst_105 {dimension_numbers = #tpu.dot_dimension_numbers<[1], [0], [0], [1], [0, 0, 1, 1], [], []>} : vector<8x128xf32>, vector<128x128xf32>, vector<8x128xf32> -> vector<8x128xf32>
    %106 = arith.addf %99, %105 : vector<8x128xf32>
    %c14 = arith.constant 14 : index
    %c0_106 = arith.constant 0 : index
    %c0_107 = arith.constant 0 : index
    %107 = vector.load %arg3[%c14, %c0_106, %c0_107] : memref<16x8x128xf32, #tpu.memory_space<vmem>>, vector<1x8x128xf32>
    %108 = vector.shape_cast %107 : vector<1x8x128xf32> to vector<8x128xf32>
    %cst_108 = arith.constant dense<0.000000e+00> : vector<8x128xf32>
    %109 = tpu.matmul %108, %7, %cst_108 {dimension_numbers = #tpu.dot_dimension_numbers<[1], [0], [0], [1], [0, 0, 1, 1], [], []>} : vector<8x128xf32>, vector<128x128xf32>, vector<8x128xf32> -> vector<8x128xf32>
    %c14_109 = arith.constant 14 : index
    %c0_110 = arith.constant 0 : index
    %c0_111 = arith.constant 0 : index
    %110 = vector.load %arg4[%c14_109, %c0_110, %c0_111] : memref<16x128x128xf32, #tpu.memory_space<vmem>>, vector<1x128x128xf32>
    %111 = vector.shape_cast %110 : vector<1x128x128xf32> to vector<128x128xf32>
    %cst_112 = arith.constant dense<0.000000e+00> : vector<8x128xf32>
    %112 = tpu.matmul %109, %111, %cst_112 {dimension_numbers = #tpu.dot_dimension_numbers<[1], [0], [0], [1], [0, 0, 1, 1], [], []>} : vector<8x128xf32>, vector<128x128xf32>, vector<8x128xf32> -> vector<8x128xf32>
    %113 = arith.addf %106, %112 : vector<8x128xf32>
    %c15 = arith.constant 15 : index
    %c0_113 = arith.constant 0 : index
    %c0_114 = arith.constant 0 : index
    %114 = vector.load %arg3[%c15, %c0_113, %c0_114] : memref<16x8x128xf32, #tpu.memory_space<vmem>>, vector<1x8x128xf32>
    %115 = vector.shape_cast %114 : vector<1x8x128xf32> to vector<8x128xf32>
    %cst_115 = arith.constant dense<0.000000e+00> : vector<8x128xf32>
    %116 = tpu.matmul %115, %7, %cst_115 {dimension_numbers = #tpu.dot_dimension_numbers<[1], [0], [0], [1], [0, 0, 1, 1], [], []>} : vector<8x128xf32>, vector<128x128xf32>, vector<8x128xf32> -> vector<8x128xf32>
    %c15_116 = arith.constant 15 : index
    %c0_117 = arith.constant 0 : index
    %c0_118 = arith.constant 0 : index
    %117 = vector.load %arg4[%c15_116, %c0_117, %c0_118] : memref<16x128x128xf32, #tpu.memory_space<vmem>>, vector<1x128x128xf32>
    %118 = vector.shape_cast %117 : vector<1x128x128xf32> to vector<128x128xf32>
    %cst_119 = arith.constant dense<0.000000e+00> : vector<8x128xf32>
    %119 = tpu.matmul %116, %118, %cst_119 {dimension_numbers = #tpu.dot_dimension_numbers<[1], [0], [0], [1], [0, 0, 1, 1], [], []>} : vector<8x128xf32>, vector<128x128xf32>, vector<8x128xf32> -> vector<8x128xf32>
    %120 = arith.addf %113, %119 : vector<8x128xf32>
    %c0_120 = arith.constant 0 : index
    %c0_121 = arith.constant 0 : index
    %121 = vector.load %arg5[%c0_120, %c0_121] : memref<1x128xf32, #tpu.memory_space<vmem>>, vector<1x128xf32>
    %122 = vector.broadcast %121 : vector<1x128xf32> to vector<8x128xf32>
    %123 = arith.addf %120, %122 : vector<8x128xf32>
    %cst_122 = arith.constant 0.000000e+00 : f32
    %124 = vector.broadcast %cst_122 : f32 to vector<8x128xf32>
    %125 = arith.maximumf %123, %124 : vector<8x128xf32>
    %cst_123 = arith.constant 0.000000e+00 : f32
    %126 = vector.broadcast %cst_123 : f32 to vector<2x256xf32>
    %c0_124 = arith.constant 0 : index
    %c0_125 = arith.constant 0 : index
    %c0_126 = arith.constant 0 : index
    %127 = vector.load %arg6[%c0_124, %c0_125, %c0_126] : memref<4x2x8xf32, #tpu.memory_space<vmem>>, vector<1x2x8xf32>
    %128 = vector.shape_cast %127 : vector<1x2x8xf32> to vector<2x8xf32>
    %cst_127 = arith.constant dense<0.000000e+00> : vector<2x128xf32>
    %129 = tpu.matmul %128, %125, %cst_127 {dimension_numbers = #tpu.dot_dimension_numbers<[1], [0], [0], [1], [0, 0, 1, 1], [], []>} : vector<2x8xf32>, vector<8x128xf32>, vector<2x128xf32> -> vector<2x128xf32>
    %c0_128 = arith.constant 0 : index
    %c0_129 = arith.constant 0 : index
    %c0_130 = arith.constant 0 : index
    %130 = vector.load %arg7[%c0_128, %c0_129, %c0_130] : memref<4x128x256xf32, #tpu.memory_space<vmem>>, vector<1x128x256xf32>
    %131 = vector.shape_cast %130 : vector<1x128x256xf32> to vector<128x256xf32>
    %cst_131 = arith.constant dense<0.000000e+00> : vector<2x256xf32>
    %132 = tpu.matmul %129, %131, %cst_131 {dimension_numbers = #tpu.dot_dimension_numbers<[1], [0], [0], [1], [0, 0, 1, 1], [], []>} : vector<2x128xf32>, vector<128x256xf32>, vector<2x256xf32> -> vector<2x256xf32>
    %133 = arith.addf %126, %132 : vector<2x256xf32>
    %c1_132 = arith.constant 1 : index
    %c0_133 = arith.constant 0 : index
    %c0_134 = arith.constant 0 : index
    %134 = vector.load %arg6[%c1_132, %c0_133, %c0_134] : memref<4x2x8xf32, #tpu.memory_space<vmem>>, vector<1x2x8xf32>
    %135 = vector.shape_cast %134 : vector<1x2x8xf32> to vector<2x8xf32>
    %cst_135 = arith.constant dense<0.000000e+00> : vector<2x128xf32>
    %136 = tpu.matmul %135, %125, %cst_135 {dimension_numbers = #tpu.dot_dimension_numbers<[1], [0], [0], [1], [0, 0, 1, 1], [], []>} : vector<2x8xf32>, vector<8x128xf32>, vector<2x128xf32> -> vector<2x128xf32>
    %c1_136 = arith.constant 1 : index
    %c0_137 = arith.constant 0 : index
    %c0_138 = arith.constant 0 : index
    %137 = vector.load %arg7[%c1_136, %c0_137, %c0_138] : memref<4x128x256xf32, #tpu.memory_space<vmem>>, vector<1x128x256xf32>
    %138 = vector.shape_cast %137 : vector<1x128x256xf32> to vector<128x256xf32>
    %cst_139 = arith.constant dense<0.000000e+00> : vector<2x256xf32>
    %139 = tpu.matmul %136, %138, %cst_139 {dimension_numbers = #tpu.dot_dimension_numbers<[1], [0], [0], [1], [0, 0, 1, 1], [], []>} : vector<2x128xf32>, vector<128x256xf32>, vector<2x256xf32> -> vector<2x256xf32>
    %140 = arith.addf %133, %139 : vector<2x256xf32>
    %c2_140 = arith.constant 2 : index
    %c0_141 = arith.constant 0 : index
    %c0_142 = arith.constant 0 : index
    %141 = vector.load %arg6[%c2_140, %c0_141, %c0_142] : memref<4x2x8xf32, #tpu.memory_space<vmem>>, vector<1x2x8xf32>
    %142 = vector.shape_cast %141 : vector<1x2x8xf32> to vector<2x8xf32>
    %cst_143 = arith.constant dense<0.000000e+00> : vector<2x128xf32>
    %143 = tpu.matmul %142, %125, %cst_143 {dimension_numbers = #tpu.dot_dimension_numbers<[1], [0], [0], [1], [0, 0, 1, 1], [], []>} : vector<2x8xf32>, vector<8x128xf32>, vector<2x128xf32> -> vector<2x128xf32>
    %c2_144 = arith.constant 2 : index
    %c0_145 = arith.constant 0 : index
    %c0_146 = arith.constant 0 : index
    %144 = vector.load %arg7[%c2_144, %c0_145, %c0_146] : memref<4x128x256xf32, #tpu.memory_space<vmem>>, vector<1x128x256xf32>
    %145 = vector.shape_cast %144 : vector<1x128x256xf32> to vector<128x256xf32>
    %cst_147 = arith.constant dense<0.000000e+00> : vector<2x256xf32>
    %146 = tpu.matmul %143, %145, %cst_147 {dimension_numbers = #tpu.dot_dimension_numbers<[1], [0], [0], [1], [0, 0, 1, 1], [], []>} : vector<2x128xf32>, vector<128x256xf32>, vector<2x256xf32> -> vector<2x256xf32>
    %147 = arith.addf %140, %146 : vector<2x256xf32>
    %c3_148 = arith.constant 3 : index
    %c0_149 = arith.constant 0 : index
    %c0_150 = arith.constant 0 : index
    %148 = vector.load %arg6[%c3_148, %c0_149, %c0_150] : memref<4x2x8xf32, #tpu.memory_space<vmem>>, vector<1x2x8xf32>
    %149 = vector.shape_cast %148 : vector<1x2x8xf32> to vector<2x8xf32>
    %cst_151 = arith.constant dense<0.000000e+00> : vector<2x128xf32>
    %150 = tpu.matmul %149, %125, %cst_151 {dimension_numbers = #tpu.dot_dimension_numbers<[1], [0], [0], [1], [0, 0, 1, 1], [], []>} : vector<2x8xf32>, vector<8x128xf32>, vector<2x128xf32> -> vector<2x128xf32>
    %c3_152 = arith.constant 3 : index
    %c0_153 = arith.constant 0 : index
    %c0_154 = arith.constant 0 : index
    %151 = vector.load %arg7[%c3_152, %c0_153, %c0_154] : memref<4x128x256xf32, #tpu.memory_space<vmem>>, vector<1x128x256xf32>
    %152 = vector.shape_cast %151 : vector<1x128x256xf32> to vector<128x256xf32>
    %cst_155 = arith.constant dense<0.000000e+00> : vector<2x256xf32>
    %153 = tpu.matmul %150, %152, %cst_155 {dimension_numbers = #tpu.dot_dimension_numbers<[1], [0], [0], [1], [0, 0, 1, 1], [], []>} : vector<2x128xf32>, vector<128x256xf32>, vector<2x256xf32> -> vector<2x256xf32>
    %154 = arith.addf %147, %153 : vector<2x256xf32>
    %c0_156 = arith.constant 0 : index
    %c0_157 = arith.constant 0 : index
    %155 = vector.load %arg8[%c0_156, %c0_157] : memref<1x256xf32, #tpu.memory_space<vmem>>, vector<1x256xf32>
    %156 = vector.broadcast %155 : vector<1x256xf32> to vector<2x256xf32>
    %157 = arith.addf %154, %156 : vector<2x256xf32>
    %cst_158 = arith.constant 0.000000e+00 : f32
    %158 = vector.broadcast %cst_158 : f32 to vector<2x256xf32>
    %159 = arith.maximumf %157, %158 : vector<2x256xf32>
    %c0_159 = arith.constant 0 : index
    %c0_160 = arith.constant 0 : index
    %160 = vector.load %arg9[%c0_159, %c0_160] : memref<256x128xf32, #tpu.memory_space<vmem>>, vector<256x128xf32>
    %cst_161 = arith.constant dense<0.000000e+00> : vector<2x128xf32>
    %161 = tpu.matmul %159, %160, %cst_161 {dimension_numbers = #tpu.dot_dimension_numbers<[1], [0], [0], [1], [0, 0, 1, 1], [], []>} : vector<2x256xf32>, vector<256x128xf32>, vector<2x128xf32> -> vector<2x128xf32>
    %c0_162 = arith.constant 0 : index
    %c0_163 = arith.constant 0 : index
    %162 = vector.load %arg10[%c0_162, %c0_163] : memref<1x128xf32, #tpu.memory_space<vmem>>, vector<1x128xf32>
    %163 = vector.broadcast %162 : vector<1x128xf32> to vector<2x128xf32>
    %164 = arith.addf %161, %163 : vector<2x128xf32>
    %cst_164 = arith.constant 0.000000e+00 : f32
    %165 = vector.broadcast %cst_164 : f32 to vector<2x128xf32>
    %166 = arith.subf %165, %164 : vector<2x128xf32>
    %167 = math.exp %166 : vector<2x128xf32>
    %cst_165 = arith.constant 1.000000e+00 : f32
    %168 = vector.broadcast %cst_165 : f32 to vector<2x128xf32>
    %169 = arith.addf %168, %167 : vector<2x128xf32>
    %170 = tpu.reciprocal %169 {approx = true} : vector<2x128xf32> -> vector<2x128xf32>
    %171 = tpu.iota {dimensions = array<i32: 1>} : vector<2x128xi32>
    %c0_i32 = arith.constant 0 : i32
    %172 = vector.broadcast %c0_i32 : i32 to vector<2x128xi32>
    %173 = arith.cmpi eq, %171, %172 : vector<2x128xi32>
    %174 = arith.select %173, %170, %164 : vector<2x128xi1>, vector<2x128xf32>
    %c0_166 = arith.constant 0 : index
    %c0_167 = arith.constant 0 : index
    %175 = vector.load %arg11[%c0_166, %c0_167] : memref<2x128xf32, #tpu.memory_space<vmem>>, vector<2x128xf32>
    tpu.vector_store %arg11[%c0_166, %c0_167], %174 {strides = array<i32>} : memref<2x128xf32, #tpu.memory_space<vmem>>, vector<2x128xf32>,
    return
  }
}

</mosaic_0001>

<llo_original>
// kernel: actor_critic_forward.1
$region0: #{actor_critic_forward.1}
  #allocation0 [shape = 'u32[]', space=smem, size = 0x4, offset = 0x4, fixed_abs, tag = 'smem constant byte address 0x4 - core index']
  #allocation1 [shape = 'u32[72,128]{1,0:T(1,128)}', space=vmem, size = 0x9000, scoped, tag = 'internal scratch']
  %s0 = inlined_call_operand.vmem [shape: f32[128,256], index: 0, kind: input, shape index: {}]
  %s1 = inlined_call_operand.vmem [shape: f32[256,128], index: 1, kind: input, shape index: {}]
  %s2 = inlined_call_operand.vmem [shape: f32[1,128], index: 2, kind: input, shape index: {}]
  %s3 = inlined_call_operand.vmem [shape: f32[16,8,128], index: 3, kind: input, shape index: {}]
  %s4 = inlined_call_operand.vmem [shape: f32[16,128,128], index: 4, kind: input, shape index: {}]
  %s5 = inlined_call_operand.vmem [shape: f32[1,128], index: 5, kind: input, shape index: {}]
  %s6 = inlined_call_operand.vmem [shape: f32[4,2,8], index: 6, kind: input, shape index: {}]
  %s7 = inlined_call_operand.vmem [shape: f32[4,128,256], index: 7, kind: input, shape index: {}]
  %s8 = inlined_call_operand.vmem [shape: f32[1,256], index: 8, kind: input, shape index: {}]
  %s9 = inlined_call_operand.vmem [shape: f32[256,128], index: 9, kind: input, shape index: {}]
  %s10 = inlined_call_operand.vmem [shape: f32[1,128], index: 10, kind: input, shape index: {}]
  %s11 = inlined_call_operand.vmem [shape: f32[2,128], index: 11, kind: output, shape index: {}]
  %s12 = sld [smem:[#allocation0]]
  $region54: #{actor_critic_forward.1} parent=0
    _
  %s14 = ssub.s32 1, %s12
  %s15 = scalar_select 0, %s14, %s12
  // Predicated region
  $region2: #{actor_critic_forward.1} parent=0 // pred_check
    _
  $region3: #{actor_critic_forward.1} parent=0 // pred_check_branch
    %17 = sbr.rel (0) target = $region5
  $region4: #{actor_critic_forward.1} parent=0 // pred_region
    _
  $region5: #{actor_critic_forward.1} parent=0 // pred_fallthru
    _
  // Predicated region
  $region6: #{actor_critic_forward.1} parent=0 // pred_check
    _
  $region7: #{actor_critic_forward.1} parent=0 // pred_check_branch
    %19 = sbr.rel (0) target = $region9
  $region8: #{actor_critic_forward.1} parent=0 // pred_region
    _
  $region9: #{actor_critic_forward.1} parent=0 // pred_fallthru
    _
  // Predicated region
  $region10: #{actor_critic_forward.1} parent=0 // pred_check
    _
  $region11: #{actor_critic_forward.1} parent=0 // pred_check_branch
    %21 = sbr.rel (0) target = $region13
  $region12: #{actor_critic_forward.1} parent=0 // pred_region
    _
  $region13: #{actor_critic_forward.1} parent=0 // pred_fallthru
    _
  // Predicated region
  $region14: #{actor_critic_forward.1} parent=0 // pred_check
    _
  $region15: #{actor_critic_forward.1} parent=0 // pred_check_branch
    %23 = sbr.rel (0) target = $region17
  $region16: #{actor_critic_forward.1} parent=0 // pred_region
    _
  $region17: #{actor_critic_forward.1} parent=0 // pred_fallthru
    _
  // Predicated region
  $region18: #{actor_critic_forward.1} parent=0 // pred_check
    _
  $region19: #{actor_critic_forward.1} parent=0 // pred_check_branch
    %25 = sbr.rel (0) target = $region21
  $region20: #{actor_critic_forward.1} parent=0 // pred_region
    _
  $region21: #{actor_critic_forward.1} parent=0 // pred_fallthru
    _
  // Predicated region
  $region22: #{actor_critic_forward.1} parent=0 // pred_check
    _
  $region23: #{actor_critic_forward.1} parent=0 // pred_check_branch
    %27 = sbr.rel (0) target = $region25
  $region24: #{actor_critic_forward.1} parent=0 // pred_region
    _
  $region25: #{actor_critic_forward.1} parent=0 // pred_fallthru
    _
  // Predicated region
  $region26: #{actor_critic_forward.1} parent=0 // pred_check
    _
  $region27: #{actor_critic_forward.1} parent=0 // pred_check_branch
    %29 = sbr.rel (0) target = $region29
  $region28: #{actor_critic_forward.1} parent=0 // pred_region
    _
  $region29: #{actor_critic_forward.1} parent=0 // pred_fallthru
    _
  // Predicated region
  $region30: #{actor_critic_forward.1} parent=0 // pred_check
    _
  $region31: #{actor_critic_forward.1} parent=0 // pred_check_branch
    %31 = sbr.rel (0) target = $region33
  $region32: #{actor_critic_forward.1} parent=0 // pred_region
    _
  $region33: #{actor_critic_forward.1} parent=0 // pred_fallthru
    _
  // Predicated region
  $region34: #{actor_critic_forward.1} parent=0 // pred_check
    _
  $region35: #{actor_critic_forward.1} parent=0 // pred_check_branch
    %33 = sbr.rel (0) target = $region37
  $region36: #{actor_critic_forward.1} parent=0 // pred_region
    _
  $region37: #{actor_critic_forward.1} parent=0 // pred_fallthru
    _
  // Predicated region
  $region38: #{actor_critic_forward.1} parent=0 // pred_check
    _
  $region39: #{actor_critic_forward.1} parent=0 // pred_check_branch
    %35 = sbr.rel (0) target = $region41
  $region40: #{actor_critic_forward.1} parent=0 // pred_region
    _
  $region41: #{actor_critic_forward.1} parent=0 // pred_fallthru
    _
  // Predicated region
  $region42: #{actor_critic_forward.1} parent=0 // pred_check
    _
  $region43: #{actor_critic_forward.1} parent=0 // pred_check_branch
    %37 = sbr.rel (0) target = $region45
  $region44: #{actor_critic_forward.1} parent=0 // pred_region
    _
  $region45: #{actor_critic_forward.1} parent=0 // pred_fallthru
    _
  %v38 = vld [vmem:[%s0] sm:$0xff]
  %v39 = vld [vmem:[%s0 + $0x8] sm:$0xff]
  %v40 = vld [vmem:[%s0 + $0x10] sm:$0xff]
  %v41 = vld [vmem:[%s0 + $0x18] sm:$0xff]
  %v42 = vld [vmem:[%s0 + $0x20] sm:$0xff]
  %v43 = vld [vmem:[%s0 + $0x28] sm:$0xff]
  %v44 = vld [vmem:[%s0 + $0x30] sm:$0xff]
  %v45 = vld [vmem:[%s0 + $0x38] sm:$0xff]
  %v46 = vld [vmem:[%s0 + $0x40] sm:$0xff]
  %v47 = vld [vmem:[%s0 + $0x48] sm:$0xff]
  %v48 = vld [vmem:[%s0 + $0x50] sm:$0xff]
  %v49 = vld [vmem:[%s0 + $0x58] sm:$0xff]
  %v50 = vld [vmem:[%s0 + $0x60] sm:$0xff]
  %v51 = vld [vmem:[%s0 + $0x68] sm:$0xff]
  %v52 = vld [vmem:[%s0 + $0x70] sm:$0xff]
  %v53 = vld [vmem:[%s0 + $0x78] sm:$0xff]
  %v54 = vld [vmem:[%s0 + $0x80] sm:$0xff]
  %v55 = vld [vmem:[%s0 + $0x88] sm:$0xff]
  %v56 = vld [vmem:[%s0 + $0x90] sm:$0xff]
  %v57 = vld [vmem:[%s0 + $0x98] sm:$0xff]
  %v58 = vld [vmem:[%s0 + $0xa0] sm:$0xff]
  %v59 = vld [vmem:[%s0 + $0xa8] sm:$0xff]
  %v60 = vld [vmem:[%s0 + $0xb0] sm:$0xff]
  %v61 = vld [vmem:[%s0 + $0xb8] sm:$0xff]
  %v62 = vld [vmem:[%s0 + $0xc0] sm:$0xff]
  %v63 = vld [vmem:[%s0 + $0xc8] sm:$0xff]
  %v64 = vld [vmem:[%s0 + $0xd0] sm:$0xff]
  %v65 = vld [vmem:[%s0 + $0xd8] sm:$0xff]
  %v66 = vld [vmem:[%s0 + $0xe0] sm:$0xff]
  %v67 = vld [vmem:[%s0 + $0xe8] sm:$0xff]
  %v68 = vld [vmem:[%s0 + $0xf0] sm:$0xff]
  %v69 = vld [vmem:[%s0 + $0xf8] sm:$0xff]
  %v70 = vld [vmem:[%s1] sm:$0xff]
  %v71 = vld [vmem:[%s1 + $0x8] sm:$0xff]
  %v72 = vld [vmem:[%s1 + $0x10] sm:$0xff]
  %v73 = vld [vmem:[%s1 + $0x18] sm:$0xff]
  %v74 = vld [vmem:[%s1 + $0x20] sm:$0xff]
  %v75 = vld [vmem:[%s1 + $0x28] sm:$0xff]
  %v76 = vld [vmem:[%s1 + $0x30] sm:$0xff]
  %v77 = vld [vmem:[%s1 + $0x38] sm:$0xff]
  %v78 = vld [vmem:[%s1 + $0x40] sm:$0xff]
  %v79 = vld [vmem:[%s1 + $0x48] sm:$0xff]
  %v80 = vld [vmem:[%s1 + $0x50] sm:$0xff]
  %v81 = vld [vmem:[%s1 + $0x58] sm:$0xff]
  %v82 = vld [vmem:[%s1 + $0x60] sm:$0xff]
  %v83 = vld [vmem:[%s1 + $0x68] sm:$0xff]
  %v84 = vld [vmem:[%s1 + $0x70] sm:$0xff]
  %v85 = vld [vmem:[%s1 + $0x78] sm:$0xff]
  %v86 = vld [vmem:[%s1 + $0x80] sm:$0xff]
  %v87 = vld [vmem:[%s1 + $0x88] sm:$0xff]
  %v88 = vld [vmem:[%s1 + $0x90] sm:$0xff]
  %v89 = vld [vmem:[%s1 + $0x98] sm:$0xff]
  %v90 = vld [vmem:[%s1 + $0xa0] sm:$0xff]
  %v91 = vld [vmem:[%s1 + $0xa8] sm:$0xff]
  %v92 = vld [vmem:[%s1 + $0xb0] sm:$0xff]
  %v93 = vld [vmem:[%s1 + $0xb8] sm:$0xff]
  %v94 = vld [vmem:[%s1 + $0xc0] sm:$0xff]
  %v95 = vld [vmem:[%s1 + $0xc8] sm:$0xff]
  %v96 = vld [vmem:[%s1 + $0xd0] sm:$0xff]
  %v97 = vld [vmem:[%s1 + $0xd8] sm:$0xff]
  %v98 = vld [vmem:[%s1 + $0xe0] sm:$0xff]
  %v99 = vld [vmem:[%s1 + $0xe8] sm:$0xff]
  %v100 = vld [vmem:[%s1 + $0xf0] sm:$0xff]
  %v101 = vld [vmem:[%s1 + $0xf8] sm:$0xff]
  %v102 = vld [vmem:[%s2] sm:$0x1]
  %v104 = vperm.slane %v102, 0
  %106 = vmatpush.msra.mxu0 %v85
  %107 = vmatpush.msra.mxu0 %v84
  %108 = vmatpush.msra.mxu0 %v83
  %109 = vmatpush.msra.mxu0 %v82
  %110 = vmatpush.msra.mxu0 %v81
  %111 = vmatpush.msra.mxu0 %v80
  %112 = vmatpush.msra.mxu0 %v79
  %113 = vmatpush.msra.mxu0 %v78
  %114 = vmatpush.msra.mxu0 %v77
  %115 = vmatpush.msra.mxu0 %v76
  %116 = vmatpush.msra.mxu0 %v75
  %117 = vmatpush.msra.mxu0 %v74
  %118 = vmatpush.msra.mxu0 %v73
  %119 = vmatpush.msra.mxu0 %v72
  %120 = vmatpush.msra.mxu0 %v71
  %121 = vmatpush.msra.mxu0 %v70
  %122 = vmatmul.f32.gmra.mxu0 %v38
  %v123 = vpop.f32.mrf.mxu0
  %v124 = vadd.f32 %v104, %v123
  %125 = vmatmul.f32.gmra.mxu0 %v40
  %v126 = vpop.f32.mrf.mxu0
  %v127 = vadd.f32 %v104, %v126
  %128 = vmatmul.f32.gmra.mxu0 %v42
  %v129 = vpop.f32.mrf.mxu0
  %v130 = vadd.f32 %v104, %v129
  %131 = vmatmul.f32.gmra.mxu0 %v44
  %v132 = vpop.f32.mrf.mxu0
  %v133 = vadd.f32 %v104, %v132
  %134 = vmatmul.f32.gmra.mxu0 %v46
  %v135 = vpop.f32.mrf.mxu0
  %v136 = vadd.f32 %v104, %v135
  %137 = vmatmul.f32.gmra.mxu0 %v48
  %v138 = vpop.f32.mrf.mxu0
  %v139 = vadd.f32 %v104, %v138
  %140 = vmatmul.f32.gmra.mxu0 %v50
  %v141 = vpop.f32.mrf.mxu0
  %v142 = vadd.f32 %v104, %v141
  %143 = vmatmul.f32.gmra.mxu0 %v52
  %v144 = vpop.f32.mrf.mxu0
  %v145 = vadd.f32 %v104, %v144
  %146 = vmatmul.f32.gmra.mxu0 %v54
  %v147 = vpop.f32.mrf.mxu0
  %v148 = vadd.f32 %v104, %v147
  %149 = vmatmul.f32.gmra.mxu0 %v56
  %v150 = vpop.f32.mrf.mxu0
  %v151 = vadd.f32 %v104, %v150
  %152 = vmatmul.f32.gmra.mxu0 %v58
  %v153 = vpop.f32.mrf.mxu0
  %v154 = vadd.f32 %v104, %v153
  %155 = vmatmul.f32.gmra.mxu0 %v60
  %v156 = vpop.f32.mrf.mxu0
  %v157 = vadd.f32 %v104, %v156
  %158 = vmatmul.f32.gmra.mxu0 %v62
  %v159 = vpop.f32.mrf.mxu0
  %v160 = vadd.f32 %v104, %v159
  %161 = vmatmul.f32.gmra.mxu0 %v64
  %v162 = vpop.f32.mrf.mxu0
  %v163 = vadd.f32 %v104, %v162
  %164 = vmatmul.f32.gmra.mxu0 %v66
  %v165 = vpop.f32.mrf.mxu0
  %v166 = vadd.f32 %v104, %v165
  %167 = vmatmul.f32.gmra.mxu0 %v68
  %v168 = vpop.f32.mrf.mxu0
  %v169 = vadd.f32 %v104, %v168
  %170 = vdwg.mxu0
  %171 = vmatpush.msra.mxu0 %v101
  %172 = vmatpush.msra.mxu0 %v100
  %173 = vmatpush.msra.mxu0 %v99
  %174 = vmatpush.msra.mxu0 %v98
  %175 = vmatpush.msra.mxu0 %v97
  %176 = vmatpush.msra.mxu0 %v96
  %177 = vmatpush.msra.mxu0 %v95
  %178 = vmatpush.msra.mxu0 %v94
  %179 = vmatpush.msra.mxu0 %v93
  %180 = vmatpush.msra.mxu0 %v92
  %181 = vmatpush.msra.mxu0 %v91
  %182 = vmatpush.msra.mxu0 %v90
  %183 = vmatpush.msra.mxu0 %v89
  %184 = vmatpush.msra.mxu0 %v88
  %185 = vmatpush.msra.mxu0 %v87
  %186 = vmatpush.msra.mxu0 %v86
  %187 = vmatmul.f32.gmra.mxu0 %v39
  %v188 = vpop.f32.mrf.mxu0
  %v189 = vadd.f32 %v124, %v188
  %190 = vmatmul.f32.gmra.mxu0 %v41
  %v191 = vpop.f32.mrf.mxu0
  %v192 = vadd.f32 %v127, %v191
  %193 = vmatmul.f32.gmra.mxu0 %v43
  %v194 = vpop.f32.mrf.mxu0
  %v195 = vadd.f32 %v130, %v194
  %196 = vmatmul.f32.gmra.mxu0 %v45
  %v197 = vpop.f32.mrf.mxu0
  %v198 = vadd.f32 %v133, %v197
  %199 = vmatmul.f32.gmra.mxu0 %v47
  %v200 = vpop.f32.mrf.mxu0
  %v201 = vadd.f32 %v136, %v200
  %202 = vmatmul.f32.gmra.mxu0 %v49
  %v203 = vpop.f32.mrf.mxu0
  %v204 = vadd.f32 %v139, %v203
  %205 = vmatmul.f32.gmra.mxu0 %v51
  %v206 = vpop.f32.mrf.mxu0
  %v207 = vadd.f32 %v142, %v206
  %208 = vmatmul.f32.gmra.mxu0 %v53
  %v209 = vpop.f32.mrf.mxu0
  %v210 = vadd.f32 %v145, %v209
  %211 = vmatmul.f32.gmra.mxu0 %v55
  %v212 = vpop.f32.mrf.mxu0
  %v213 = vadd.f32 %v148, %v212
  %214 = vmatmul.f32.gmra.mxu0 %v57
  %v215 = vpop.f32.mrf.mxu0
  %v216 = vadd.f32 %v151, %v215
  %217 = vmatmul.f32.gmra.mxu0 %v59
  %v218 = vpop.f32.mrf.mxu0
  %v219 = vadd.f32 %v154, %v218
  %220 = vmatmul.f32.gmra.mxu0 %v61
  %v221 = vpop.f32.mrf.mxu0
  %v222 = vadd.f32 %v157, %v221
  %223 = vmatmul.f32.gmra.mxu0 %v63
  %v224 = vpop.f32.mrf.mxu0
  %v225 = vadd.f32 %v160, %v224
  %226 = vmatmul.f32.gmra.mxu0 %v65
  %v227 = vpop.f32.mrf.mxu0
  %v228 = vadd.f32 %v163, %v227
  %229 = vmatmul.f32.gmra.mxu0 %v67
  %v230 = vpop.f32.mrf.mxu0
  %v231 = vadd.f32 %v166, %v230
  %232 = vmatmul.f32.gmra.mxu0 %v69
  %v233 = vpop.f32.mrf.mxu0
  %v234 = vadd.f32 %v169, %v233
  %235 = vdwg.mxu0
  %v236 = vmax.f32 %v189, 0.0
  %v237 = vmax.f32 %v192, 0.0
  %v238 = vmax.f32 %v195, 0.0
  %v239 = vmax.f32 %v198, 0.0
  %v240 = vmax.f32 %v201, 0.0
  %v241 = vmax.f32 %v204, 0.0
  %v242 = vmax.f32 %v207, 0.0
  %v243 = vmax.f32 %v210, 0.0
  %v244 = vmax.f32 %v213, 0.0
  %v245 = vmax.f32 %v216, 0.0
  %v246 = vmax.f32 %v219, 0.0
  %v247 = vmax.f32 %v222, 0.0
  %v248 = vmax.f32 %v225, 0.0
  %v249 = vmax.f32 %v228, 0.0
  %v250 = vmax.f32 %v231, 0.0
  %v251 = vmax.f32 %v234, 0.0
  %v252 = vld [vmem:[%s3] sm:$0xff]
  %253 = vmatpush.msra.mxu0 %v251
  %254 = vmatpush.msra.mxu0 %v250
  %255 = vmatpush.msra.mxu0 %v249
  %256 = vmatpush.msra.mxu0 %v248
  %257 = vmatpush.msra.mxu0 %v247
  %258 = vmatpush.msra.mxu0 %v246
  %259 = vmatpush.msra.mxu0 %v245
  %260 = vmatpush.msra.mxu0 %v244
  %261 = vmatpush.msra.mxu0 %v243
  %262 = vmatpush.msra.mxu0 %v242
  %263 = vmatpush.msra.mxu0 %v241
  %264 = vmatpush.msra.mxu0 %v240
  %265 = vmatpush.msra.mxu0 %v239
  %266 = vmatpush.msra.mxu0 %v238
  %267 = vmatpush.msra.mxu0 %v237
  %268 = vmatpush.msra.mxu0 %v236
  %269 = vmatmul.f32.gmra.mxu0 %v252
  %v270 = vpop.f32.mrf.mxu0
  %v271 = vadd.f32 0.0, %v270
  %272 = vdwg.mxu0
  %v273 = vld [vmem:[%s4] sm:$0xff]
  %v274 = vld [vmem:[%s4 + $0x8] sm:$0xff]
  %v275 = vld [vmem:[%s4 + $0x10] sm:$0xff]
  %v276 = vld [vmem:[%s4 + $0x18] sm:$0xff]
  %v277 = vld [vmem:[%s4 + $0x20] sm:$0xff]
  %v278 = vld [vmem:[%s4 + $0x28] sm:$0xff]
  %v279 = vld [vmem:[%s4 + $0x30] sm:$0xff]
  %v280 = vld [vmem:[%s4 + $0x38] sm:$0xff]
  %v281 = vld [vmem:[%s4 + $0x40] sm:$0xff]
  %v282 = vld [vmem:[%s4 + $0x48] sm:$0xff]
  %v283 = vld [vmem:[%s4 + $0x50] sm:$0xff]
  %v284 = vld [vmem:[%s4 + $0x58] sm:$0xff]
  %v285 = vld [vmem:[%s4 + $0x60] sm:$0xff]
  %v286 = vld [vmem:[%s4 + $0x68] sm:$0xff]
  %v287 = vld [vmem:[%s4 + $0x70] sm:$0xff]
  %v288 = vld [vmem:[%s4 + $0x78] sm:$0xff]
  %s289 = scalar_lea.vmem %s3, 8
  %v290 = vld [vmem:[%s289] sm:$0xff]
  %291 = vmatpush.msra.mxu0 %v251
  %292 = vmatpush.msra.mxu0 %v250
  %293 = vmatpush.msra.mxu0 %v249
  %294 = vmatpush.msra.mxu0 %v248
  %295 = vmatpush.msra.mxu0 %v247
  %296 = vmatpush.msra.mxu0 %v246
  %297 = vmatpush.msra.mxu0 %v245
  %298 = vmatpush.msra.mxu0 %v244
  %299 = vmatpush.msra.mxu0 %v243
  %300 = vmatpush.msra.mxu0 %v242
  %301 = vmatpush.msra.mxu0 %v241
  %302 = vmatpush.msra.mxu0 %v240
  %303 = vmatpush.msra.mxu0 %v239
  %304 = vmatpush.msra.mxu0 %v238
  %305 = vmatpush.msra.mxu0 %v237
  %306 = vmatpush.msra.mxu0 %v236
  %307 = vmatmul.f32.gmra.mxu0 %v290
  %v308 = vpop.f32.mrf.mxu0
  %v309 = vadd.f32 0.0, %v308
  %310 = vdwg.mxu0
  %s311 = scalar_lea.vmem %s4, 128
  %v312 = vld [vmem:[%s311] sm:$0xff]
  %v313 = vld [vmem:[%s311 + $0x8] sm:$0xff]
  %v314 = vld [vmem:[%s311 + $0x10] sm:$0xff]
  %v315 = vld [vmem:[%s311 + $0x18] sm:$0xff]
  %v316 = vld [vmem:[%s311 + $0x20] sm:$0xff]
  %v317 = vld [vmem:[%s311 + $0x28] sm:$0xff]
  %v318 = vld [vmem:[%s311 + $0x30] sm:$0xff]
  %v319 = vld [vmem:[%s311 + $0x38] sm:$0xff]
  %v320 = vld [vmem:[%s311 + $0x40] sm:$0xff]
  %v321 = vld [vmem:[%s311 + $0x48] sm:$0xff]
  %v322 = vld [vmem:[%s311 + $0x50] sm:$0xff]
  %v323 = vld [vmem:[%s311 + $0x58] sm:$0xff]
  %v324 = vld [vmem:[%s311 + $0x60] sm:$0xff]
  %v325 = vld [vmem:[%s311 + $0x68] sm:$0xff]
  %v326 = vld [vmem:[%s311 + $0x70] sm:$0xff]
  %v327 = vld [vmem:[%s311 + $0x78] sm:$0xff]
  %328 = vmatpush.msra.mxu0 %v327
  %329 = vmatpush.msra.mxu0 %v326
  %330 = vmatpush.msra.mxu0 %v325
  %331 = vmatpush.msra.mxu0 %v324
  %332 = vmatpush.msra.mxu0 %v323
  %333 = vmatpush.msra.mxu0 %v322
  %334 = vmatpush.msra.mxu0 %v321
  %335 = vmatpush.msra.mxu0 %v320
  %336 = vmatpush.msra.mxu0 %v319
  %337 = vmatpush.msra.mxu0 %v318
  %338 = vmatpush.msra.mxu0 %v317
  %339 = vmatpush.msra.mxu0 %v316
  %340 = vmatpush.msra.mxu0 %v315
  %341 = vmatpush.msra.mxu0 %v314
  %342 = vmatpush.msra.mxu0 %v313
  %343 = vmatpush.msra.mxu0 %v312
  %344 = vmatmul.f32.gmra.mxu0 %v309
  %v345 = vpop.f32.mrf.mxu0
  %v346 = vadd.f32 0.0, %v345
  %347 = vdwg.mxu0
  %348 = vmatpush.msra.mxu0 %v288
  %349 = vmatpush.msra.mxu0 %v287
  %350 = vmatpush.msra.mxu0 %v286
  %351 = vmatpush.msra.mxu0 %v285
  %352 = vmatpush.msra.mxu0 %v284
  %353 = vmatpush.msra.mxu0 %v283
  %354 = vmatpush.msra.mxu0 %v282
  %355 = vmatpush.msra.mxu0 %v281
  %356 = vmatpush.msra.mxu0 %v280
  %357 = vmatpush.msra.mxu0 %v279
  %358 = vmatpush.msra.mxu0 %v278
  %359 = vmatpush.msra.mxu0 %v277
  %360 = vmatpush.msra.mxu0 %v276
  %361 = vmatpush.msra.mxu0 %v275
  %362 = vmatpush.msra.mxu0 %v274
  %363 = vmatpush.msra.mxu0 %v273
  %364 = vmatmul.f32.gmra.mxu0 %v271
  %v365 = vpop.f32.mrf.mxu0
  %v366 = vadd.f32 %v346, %v365
  %367 = vdwg.mxu0
  %s368 = scalar_lea.vmem %s3, 16
  %v369 = vld [vmem:[%s368] sm:$0xff]
  %370 = vmatpush.msra.mxu0 %v251
  %371 = vmatpush.msra.mxu0 %v250
  %372 = vmatpush.msra.mxu0 %v249
  %373 = vmatpush.msra.mxu0 %v248
  %374 = vmatpush.msra.mxu0 %v247
  %375 = vmatpush.msra.mxu0 %v246
  %376 = vmatpush.msra.mxu0 %v245
  %377 = vmatpush.msra.mxu0 %v244
  %378 = vmatpush.msra.mxu0 %v243
  %379 = vmatpush.msra.mxu0 %v242
  %380 = vmatpush.msra.mxu0 %v241
  %381 = vmatpush.msra.mxu0 %v240
  %382 = vmatpush.msra.mxu0 %v239
  %383 = vmatpush.msra.mxu0 %v238
  %384 = vmatpush.msra.mxu0 %v237
  %385 = vmatpush.msra.mxu0 %v236
  %386 = vmatmul.f32.gmra.mxu0 %v369
  %v387 = vpop.f32.mrf.mxu0
  %v388 = vadd.f32 0.0, %v387
  %389 = vdwg.mxu0
  %s390 = scalar_lea.vmem %s4, 256
  %v391 = vld [vmem:[%s390] sm:$0xff]
  %v392 = vld [vmem:[%s390 + $0x8] sm:$0xff]
  %v393 = vld [vmem:[%s390 + $0x10] sm:$0xff]
  %v394 = vld [vmem:[%s390 + $0x18] sm:$0xff]
  %v395 = vld [vmem:[%s390 + $0x20] sm:$0xff]
  %v396 = vld [vmem:[%s390 + $0x28] sm:$0xff]
  %v397 = vld [vmem:[%s390 + $0x30] sm:$0xff]
  %v398 = vld [vmem:[%s390 + $0x38] sm:$0xff]
  %v399 = vld [vmem:[%s390 + $0x40] sm:$0xff]
  %v400 = vld [vmem:[%s390 + $0x48] sm:$0xff]
  %v401 = vld [vmem:[%s390 + $0x50] sm:$0xff]
  %v402 = vld [vmem:[%s390 + $0x58] sm:$0xff]
  %v403 = vld [vmem:[%s390 + $0x60] sm:$0xff]
  %v404 = vld [vmem:[%s390 + $0x68] sm:$0xff]
  %v405 = vld [vmem:[%s390 + $0x70] sm:$0xff]
  %v406 = vld [vmem:[%s390 + $0x78] sm:$0xff]
  %407 = vmatpush.msra.mxu0 %v406
  %408 = vmatpush.msra.mxu0 %v405
  %409 = vmatpush.msra.mxu0 %v404
  %410 = vmatpush.msra.mxu0 %v403
  %411 = vmatpush.msra.mxu0 %v402
  %412 = vmatpush.msra.mxu0 %v401
  %413 = vmatpush.msra.mxu0 %v400
  %414 = vmatpush.msra.mxu0 %v399
  %415 = vmatpush.msra.mxu0 %v398
  %416 = vmatpush.msra.mxu0 %v397
  %417 = vmatpush.msra.mxu0 %v396
  %418 = vmatpush.msra.mxu0 %v395
  %419 = vmatpush.msra.mxu0 %v394
  %420 = vmatpush.msra.mxu0 %v393
  %421 = vmatpush.msra.mxu0 %v392
  %422 = vmatpush.msra.mxu0 %v391
  %423 = vmatmul.f32.gmra.mxu0 %v388
  %v424 = vpop.f32.mrf.mxu0
  %v425 = vadd.f32 0.0, %v424
  %426 = vdwg.mxu0
  %v427 = vadd.f32 %v366, %v425
  %s428 = scalar_lea.vmem %s3, 24
  %v429 = vld [vmem:[%s428] sm:$0xff]
  %430 = vmatpush.msra.mxu0 %v251
  %431 = vmatpush.msra.mxu0 %v250
  %432 = vmatpush.msra.mxu0 %v249
  %433 = vmatpush.msra.mxu0 %v248
  %434 = vmatpush.msra.mxu0 %v247
  %435 = vmatpush.msra.mxu0 %v246
  %436 = vmatpush.msra.mxu0 %v245
  %437 = vmatpush.msra.mxu0 %v244
  %438 = vmatpush.msra.mxu0 %v243
  %439 = vmatpush.msra.mxu0 %v242
  %440 = vmatpush.msra.mxu0 %v241
  %441 = vmatpush.msra.mxu0 %v240
  %442 = vmatpush.msra.mxu0 %v239
  %443 = vmatpush.msra.mxu0 %v238
  %444 = vmatpush.msra.mxu0 %v237
  %445 = vmatpush.msra.mxu0 %v236
  %446 = vmatmul.f32.gmra.mxu0 %v429
  %v447 = vpop.f32.mrf.mxu0
  %v448 = vadd.f32 0.0, %v447
  %449 = vdwg.mxu0
  %s450 = scalar_lea.vmem %s4, 384
  %v451 = vld [vmem:[%s450] sm:$0xff]
  %v452 = vld [vmem:[%s450 + $0x8] sm:$0xff]
  %v453 = vld [vmem:[%s450 + $0x10] sm:$0xff]
  %v454 = vld [vmem:[%s450 + $0x18] sm:$0xff]
  %v455 = vld [vmem:[%s450 + $0x20] sm:$0xff]
  %v456 = vld [vmem:[%s450 + $0x28] sm:$0xff]
  %v457 = vld [vmem:[%s450 + $0x30] sm:$0xff]
  %v458 = vld [vmem:[%s450 + $0x38] sm:$0xff]
  %v459 = vld [vmem:[%s450 + $0x40] sm:$0xff]
  %v460 = vld [vmem:[%s450 + $0x48] sm:$0xff]
  %v461 = vld [vmem:[%s450 + $0x50] sm:$0xff]
  %v462 = vld [vmem:[%s450 + $0x58] sm:$0xff]
  %v463 = vld [vmem:[%s450 + $0x60] sm:$0xff]
  %v464 = vld [vmem:[%s450 + $0x68] sm:$0xff]
  %v465 = vld [vmem:[%s450 + $0x70] sm:$0xff]
  %v466 = vld [vmem:[%s450 + $0x78] sm:$0xff]
  %467 = vmatpush.msra.mxu0 %v466
  %468 = vmatpush.msra.mxu0 %v465
  %469 = vmatpush.msra.mxu0 %v464
  %470 = vmatpush.msra.mxu0 %v463
  %471 = vmatpush.msra.mxu0 %v462
  %472 = vmatpush.msra.mxu0 %v461
  %473 = vmatpush.msra.mxu0 %v460
  %474 = vmatpush.msra.mxu0 %v459
  %475 = vmatpush.msra.mxu0 %v458
  %476 = vmatpush.msra.mxu0 %v457
  %477 = vmatpush.msra.mxu0 %v456
  %478 = vmatpush.msra.mxu0 %v455
  %479 = vmatpush.msra.mxu0 %v454
  %480 = vmatpush.msra.mxu0 %v453
  %481 = vmatpush.msra.mxu0 %v452
  %482 = vmatpush.msra.mxu0 %v451
  %483 = vmatmul.f32.gmra.mxu0 %v448
  %v484 = vpop.f32.mrf.mxu0
  %v485 = vadd.f32 0.0, %v484
  %486 = vdwg.mxu0
  %v487 = vadd.f32 %v427, %v485
  %s488 = scalar_lea.vmem %s3, 32
  %v489 = vld [vmem:[%s488] sm:$0xff]
  %490 = vmatpush.msra.mxu0 %v251
  %491 = vmatpush.msra.mxu0 %v250
  %492 = vmatpush.msra.mxu0 %v249
  %493 = vmatpush.msra.mxu0 %v248
  %494 = vmatpush.msra.mxu0 %v247
  %495 = vmatpush.msra.mxu0 %v246
  %496 = vmatpush.msra.mxu0 %v245
  %497 = vmatpush.msra.mxu0 %v244
  %498 = vmatpush.msra.mxu0 %v243
  %499 = vmatpush.msra.mxu0 %v242
  %500 = vmatpush.msra.mxu0 %v241
  %501 = vmatpush.msra.mxu0 %v240
  %502 = vmatpush.msra.mxu0 %v239
  %503 = vmatpush.msra.mxu0 %v238
  %504 = vmatpush.msra.mxu0 %v237
  %505 = vmatpush.msra.mxu0 %v236
  %506 = vmatmul.f32.gmra.mxu0 %v489
  %v507 = vpop.f32.mrf.mxu0
  %v508 = vadd.f32 0.0, %v507
  %509 = vdwg.mxu0
  %s510 = scalar_lea.vmem %s4, 512
  %v511 = vld [vmem:[%s510] sm:$0xff]
  %v512 = vld [vmem:[%s510 + $0x8] sm:$0xff]
  %v513 = vld [vmem:[%s510 + $0x10] sm:$0xff]
  %v514 = vld [vmem:[%s510 + $0x18] sm:$0xff]
  %v515 = vld [vmem:[%s510 + $0x20] sm:$0xff]
  %v516 = vld [vmem:[%s510 + $0x28] sm:$0xff]
  %v517 = vld [vmem:[%s510 + $0x30] sm:$0xff]
  %v518 = vld [vmem:[%s510 + $0x38] sm:$0xff]
  %v519 = vld [vmem:[%s510 + $0x40] sm:$0xff]
  %v520 = vld [vmem:[%s510 + $0x48] sm:$0xff]
  %v521 = vld [vmem:[%s510 + $0x50] sm:$0xff]
  %v522 = vld [vmem:[%s510 + $0x58] sm:$0xff]
  %v523 = vld [vmem:[%s510 + $0x60] sm:$0xff]
  %v524 = vld [vmem:[%s510 + $0x68] sm:$0xff]
  %v525 = vld [vmem:[%s510 + $0x70] sm:$0xff]
  %v526 = vld [vmem:[%s510 + $0x78] sm:$0xff]
  %527 = vmatpush.msra.mxu0 %v526
  %528 = vmatpush.msra.mxu0 %v525
  %529 = vmatpush.msra.mxu0 %v524
  %530 = vmatpush.msra.mxu0 %v523
  %531 = vmatpush.msra.mxu0 %v522
  %532 = vmatpush.msra.mxu0 %v521
  %533 = vmatpush.msra.mxu0 %v520
  %534 = vmatpush.msra.mxu0 %v519
  %535 = vmatpush.msra.mxu0 %v518
  %536 = vmatpush.msra.mxu0 %v517
  %537 = vmatpush.msra.mxu0 %v516
  %538 = vmatpush.msra.mxu0 %v515
  %539 = vmatpush.msra.mxu0 %v514
  %540 = vmatpush.msra.mxu0 %v513
  %541 = vmatpush.msra.mxu0 %v512
  %542 = vmatpush.msra.mxu0 %v511
  %543 = vmatmul.f32.gmra.mxu0 %v508
  %v544 = vpop.f32.mrf.mxu0
  %v545 = vadd.f32 0.0, %v544
  %546 = vdwg.mxu0
  %v547 = vadd.f32 %v487, %v545
  %s548 = scalar_lea.vmem %s3, 40
  %v549 = vld [vmem:[%s548] sm:$0xff]
  %550 = vmatpush.msra.mxu0 %v251
  %551 = vmatpush.msra.mxu0 %v250
  %552 = vmatpush.msra.mxu0 %v249
  %553 = vmatpush.msra.mxu0 %v248
  %554 = vmatpush.msra.mxu0 %v247
  %555 = vmatpush.msra.mxu0 %v246
  %556 = vmatpush.msra.mxu0 %v245
  %557 = vmatpush.msra.mxu0 %v244
  %558 = vmatpush.msra.mxu0 %v243
  %559 = vmatpush.msra.mxu0 %v242
  %560 = vmatpush.msra.mxu0 %v241
  %561 = vmatpush.msra.mxu0 %v240
  %562 = vmatpush.msra.mxu0 %v239
  %563 = vmatpush.msra.mxu0 %v238
  %564 = vmatpush.msra.mxu0 %v237
  %565 = vmatpush.msra.mxu0 %v236
  %566 = vmatmul.f32.gmra.mxu0 %v549
  %v567 = vpop.f32.mrf.mxu0
  %v568 = vadd.f32 0.0, %v567
  %569 = vdwg.mxu0
  %s570 = scalar_lea.vmem %s4, 640
  %v571 = vld [vmem:[%s570] sm:$0xff]
  %v572 = vld [vmem:[%s570 + $0x8] sm:$0xff]
  %v573 = vld [vmem:[%s570 + $0x10] sm:$0xff]
  %v574 = vld [vmem:[%s570 + $0x18] sm:$0xff]
  %v575 = vld [vmem:[%s570 + $0x20] sm:$0xff]
  %v576 = vld [vmem:[%s570 + $0x28] sm:$0xff]
  %v577 = vld [vmem:[%s570 + $0x30] sm:$0xff]
  %v578 = vld [vmem:[%s570 + $0x38] sm:$0xff]
  %v579 = vld [vmem:[%s570 + $0x40] sm:$0xff]
  %v580 = vld [vmem:[%s570 + $0x48] sm:$0xff]
  %v581 = vld [vmem:[%s570 + $0x50] sm:$0xff]
  %v582 = vld [vmem:[%s570 + $0x58] sm:$0xff]
  %v583 = vld [vmem:[%s570 + $0x60] sm:$0xff]
  %v584 = vld [vmem:[%s570 + $0x68] sm:$0xff]
  %v585 = vld [vmem:[%s570 + $0x70] sm:$0xff]
  %v586 = vld [vmem:[%s570 + $0x78] sm:$0xff]
  %587 = vmatpush.msra.mxu0 %v586
  %588 = vmatpush.msra.mxu0 %v585
  %589 = vmatpush.msra.mxu0 %v584
  %590 = vmatpush.msra.mxu0 %v583
  %591 = vmatpush.msra.mxu0 %v582
  %592 = vmatpush.msra.mxu0 %v581
  %593 = vmatpush.msra.mxu0 %v580
  %594 = vmatpush.msra.mxu0 %v579
  %595 = vmatpush.msra.mxu0 %v578
  %596 = vmatpush.msra.mxu0 %v577
  %597 = vmatpush.msra.mxu0 %v576
  %598 = vmatpush.msra.mxu0 %v575
  %599 = vmatpush.msra.mxu0 %v574
  %600 = vmatpush.msra.mxu0 %v573
  %601 = vmatpush.msra.mxu0 %v572
  %602 = vmatpush.msra.mxu0 %v571
  %603 = vmatmul.f32.gmra.mxu0 %v568
  %v604 = vpop.f32.mrf.mxu0
  %v605 = vadd.f32 0.0, %v604
  %606 = vdwg.mxu0
  %v607 = vadd.f32 %v547, %v605
  %s608 = scalar_lea.vmem %s3, 48
  %v609 = vld [vmem:[%s608] sm:$0xff]
  %610 = vmatpush.msra.mxu0 %v251
  %611 = vmatpush.msra.mxu0 %v250
  %612 = vmatpush.msra.mxu0 %v249
  %613 = vmatpush.msra.mxu0 %v248
  %614 = vmatpush.msra.mxu0 %v247
  %615 = vmatpush.msra.mxu0 %v246
  %616 = vmatpush.msra.mxu0 %v245
  %617 = vmatpush.msra.mxu0 %v244
  %618 = vmatpush.msra.mxu0 %v243
  %619 = vmatpush.msra.mxu0 %v242
  %620 = vmatpush.msra.mxu0 %v241
  %621 = vmatpush.msra.mxu0 %v240
  %622 = vmatpush.msra.mxu0 %v239
  %623 = vmatpush.msra.mxu0 %v238
  %624 = vmatpush.msra.mxu0 %v237
  %625 = vmatpush.msra.mxu0 %v236
  %626 = vmatmul.f32.gmra.mxu0 %v609
  %v627 = vpop.f32.mrf.mxu0
  %v628 = vadd.f32 0.0, %v627
  %629 = vdwg.mxu0
  %s630 = scalar_lea.vmem %s4, 768
  %v631 = vld [vmem:[%s630] sm:$0xff]
  %v632 = vld [vmem:[%s630 + $0x8] sm:$0xff]
  %v633 = vld [vmem:[%s630 + $0x10] sm:$0xff]
  %v634 = vld [vmem:[%s630 + $0x18] sm:$0xff]
  %v635 = vld [vmem:[%s630 + $0x20] sm:$0xff]
  %v636 = vld [vmem:[%s630 + $0x28] sm:$0xff]
  %v637 = vld [vmem:[%s630 + $0x30] sm:$0xff]
  %v638 = vld [vmem:[%s630 + $0x38] sm:$0xff]
  %v639 = vld [vmem:[%s630 + $0x40] sm:$0xff]
  %v640 = vld [vmem:[%s630 + $0x48] sm:$0xff]
  %v641 = vld [vmem:[%s630 + $0x50] sm:$0xff]
  %v642 = vld [vmem:[%s630 + $0x58] sm:$0xff]
  %v643 = vld [vmem:[%s630 + $0x60] sm:$0xff]
  %v644 = vld [vmem:[%s630 + $0x68] sm:$0xff]
  %v645 = vld [vmem:[%s630 + $0x70] sm:$0xff]
  %v646 = vld [vmem:[%s630 + $0x78] sm:$0xff]
  %647 = vmatpush.msra.mxu0 %v646
  %648 = vmatpush.msra.mxu0 %v645
  %649 = vmatpush.msra.mxu0 %v644
  %650 = vmatpush.msra.mxu0 %v643
  %651 = vmatpush.msra.mxu0 %v642
  %652 = vmatpush.msra.mxu0 %v641
  %653 = vmatpush.msra.mxu0 %v640
  %654 = vmatpush.msra.mxu0 %v639
  %655 = vmatpush.msra.mxu0 %v638
  %656 = vmatpush.msra.mxu0 %v637
  %657 = vmatpush.msra.mxu0 %v636
  %658 = vmatpush.msra.mxu0 %v635
  %659 = vmatpush.msra.mxu0 %v634
  %660 = vmatpush.msra.mxu0 %v633
  %661 = vmatpush.msra.mxu0 %v632
  %662 = vmatpush.msra.mxu0 %v631
  %663 = vmatmul.f32.gmra.mxu0 %v628
  %v664 = vpop.f32.mrf.mxu0
  %v665 = vadd.f32 0.0, %v664
  %666 = vdwg.mxu0
  %v667 = vadd.f32 %v607, %v665
  %s668 = scalar_lea.vmem %s3, 56
  %v669 = vld [vmem:[%s668] sm:$0xff]
  %670 = vmatpush.msra.mxu0 %v251
  %671 = vmatpush.msra.mxu0 %v250
  %672 = vmatpush.msra.mxu0 %v249
  %673 = vmatpush.msra.mxu0 %v248
  %674 = vmatpush.msra.mxu0 %v247
  %675 = vmatpush.msra.mxu0 %v246
  %676 = vmatpush.msra.mxu0 %v245
  %677 = vmatpush.msra.mxu0 %v244
  %678 = vmatpush.msra.mxu0 %v243
  %679 = vmatpush.msra.mxu0 %v242
  %680 = vmatpush.msra.mxu0 %v241
  %681 = vmatpush.msra.mxu0 %v240
  %682 = vmatpush.msra.mxu0 %v239
  %683 = vmatpush.msra.mxu0 %v238
  %684 = vmatpush.msra.mxu0 %v237
  %685 = vmatpush.msra.mxu0 %v236
  %686 = vmatmul.f32.gmra.mxu0 %v669
  %v687 = vpop.f32.mrf.mxu0
  %v688 = vadd.f32 0.0, %v687
  %689 = vdwg.mxu0
  %s690 = scalar_lea.vmem %s4, 896
  %v691 = vld [vmem:[%s690] sm:$0xff]
  %v692 = vld [vmem:[%s690 + $0x8] sm:$0xff]
  %v693 = vld [vmem:[%s690 + $0x10] sm:$0xff]
  %v694 = vld [vmem:[%s690 + $0x18] sm:$0xff]
  %v695 = vld [vmem:[%s690 + $0x20] sm:$0xff]
  %v696 = vld [vmem:[%s690 + $0x28] sm:$0xff]
  %v697 = vld [vmem:[%s690 + $0x30] sm:$0xff]
  %v698 = vld [vmem:[%s690 + $0x38] sm:$0xff]
  %v699 = vld [vmem:[%s690 + $0x40] sm:$0xff]
  %v700 = vld [vmem:[%s690 + $0x48] sm:$0xff]
  %v701 = vld [vmem:[%s690 + $0x50] sm:$0xff]
  %v702 = vld [vmem:[%s690 + $0x58] sm:$0xff]
  %v703 = vld [vmem:[%s690 + $0x60] sm:$0xff]
  %v704 = vld [vmem:[%s690 + $0x68] sm:$0xff]
  %v705 = vld [vmem:[%s690 + $0x70] sm:$0xff]
  %v706 = vld [vmem:[%s690 + $0x78] sm:$0xff]
  %707 = vmatpush.msra.mxu0 %v706
  %708 = vmatpush.msra.mxu0 %v705
  %709 = vmatpush.msra.mxu0 %v704
  %710 = vmatpush.msra.mxu0 %v703
  %711 = vmatpush.msra.mxu0 %v702
  %712 = vmatpush.msra.mxu0 %v701
  %713 = vmatpush.msra.mxu0 %v700
  %714 = vmatpush.msra.mxu0 %v699
  %715 = vmatpush.msra.mxu0 %v698
  %716 = vmatpush.msra.mxu0 %v697
  %717 = vmatpush.msra.mxu0 %v696
  %718 = vmatpush.msra.mxu0 %v695
  %719 = vmatpush.msra.mxu0 %v694
  %720 = vmatpush.msra.mxu0 %v693
  %721 = vmatpush.msra.mxu0 %v692
  %722 = vmatpush.msra.mxu0 %v691
  %723 = vmatmul.f32.gmra.mxu0 %v688
  %v724 = vpop.f32.mrf.mxu0
  %v725 = vadd.f32 0.0, %v724
  %726 = vdwg.mxu0
  %v727 = vadd.f32 %v667, %v725
  %s728 = scalar_lea.vmem %s3, 64
  %v729 = vld [vmem:[%s728] sm:$0xff]
  %730 = vmatpush.msra.mxu0 %v251
  %731 = vmatpush.msra.mxu0 %v250
  %732 = vmatpush.msra.mxu0 %v249
  %733 = vmatpush.msra.mxu0 %v248
  %734 = vmatpush.msra.mxu0 %v247
  %735 = vmatpush.msra.mxu0 %v246
  %736 = vmatpush.msra.mxu0 %v245
  %737 = vmatpush.msra.mxu0 %v244
  %738 = vmatpush.msra.mxu0 %v243
  %739 = vmatpush.msra.mxu0 %v242
  %740 = vmatpush.msra.mxu0 %v241
  %741 = vmatpush.msra.mxu0 %v240
  %742 = vmatpush.msra.mxu0 %v239
  %743 = vmatpush.msra.mxu0 %v238
  %744 = vmatpush.msra.mxu0 %v237
  %745 = vmatpush.msra.mxu0 %v236
  %746 = vmatmul.f32.gmra.mxu0 %v729
  %v747 = vpop.f32.mrf.mxu0
  %v748 = vadd.f32 0.0, %v747
  %749 = vdwg.mxu0
  %s750 = scalar_lea.vmem %s4, 1024
  %v751 = vld [vmem:[%s750] sm:$0xff]
  %v752 = vld [vmem:[%s750 + $0x8] sm:$0xff]
  %v753 = vld [vmem:[%s750 + $0x10] sm:$0xff]
  %v754 = vld [vmem:[%s750 + $0x18] sm:$0xff]
  %v755 = vld [vmem:[%s750 + $0x20] sm:$0xff]
  %v756 = vld [vmem:[%s750 + $0x28] sm:$0xff]
  %v757 = vld [vmem:[%s750 + $0x30] sm:$0xff]
  %v758 = vld [vmem:[%s750 + $0x38] sm:$0xff]
  %v759 = vld [vmem:[%s750 + $0x40] sm:$0xff]
  %v760 = vld [vmem:[%s750 + $0x48] sm:$0xff]
  %v761 = vld [vmem:[%s750 + $0x50] sm:$0xff]
  %v762 = vld [vmem:[%s750 + $0x58] sm:$0xff]
  %v763 = vld [vmem:[%s750 + $0x60] sm:$0xff]
  %v764 = vld [vmem:[%s750 + $0x68] sm:$0xff]
  %v765 = vld [vmem:[%s750 + $0x70] sm:$0xff]
  %v766 = vld [vmem:[%s750 + $0x78] sm:$0xff]
  %767 = vmatpush.msra.mxu0 %v766
  %768 = vmatpush.msra.mxu0 %v765
  %769 = vmatpush.msra.mxu0 %v764
  %770 = vmatpush.msra.mxu0 %v763
  %771 = vmatpush.msra.mxu0 %v762
  %772 = vmatpush.msra.mxu0 %v761
  %773 = vmatpush.msra.mxu0 %v760
  %774 = vmatpush.msra.mxu0 %v759
  %775 = vmatpush.msra.mxu0 %v758
  %776 = vmatpush.msra.mxu0 %v757
  %777 = vmatpush.msra.mxu0 %v756
  %778 = vmatpush.msra.mxu0 %v755
  %779 = vmatpush.msra.mxu0 %v754
  %780 = vmatpush.msra.mxu0 %v753
  %781 = vmatpush.msra.mxu0 %v752
  %782 = vmatpush.msra.mxu0 %v751
  %783 = vmatmul.f32.gmra.mxu0 %v748
  %v784 = vpop.f32.mrf.mxu0
  %v785 = vadd.f32 0.0, %v784
  %786 = vdwg.mxu0
  %v787 = vadd.f32 %v727, %v785
  %s788 = scalar_lea.vmem %s3, 72
  %v789 = vld [vmem:[%s788] sm:$0xff]
  %790 = vmatpush.msra.mxu0 %v251
  %791 = vmatpush.msra.mxu0 %v250
  %792 = vmatpush.msra.mxu0 %v249
  %793 = vmatpush.msra.mxu0 %v248
  %794 = vmatpush.msra.mxu0 %v247
  %795 = vmatpush.msra.mxu0 %v246
  %796 = vmatpush.msra.mxu0 %v245
  %797 = vmatpush.msra.mxu0 %v244
  %798 = vmatpush.msra.mxu0 %v243
  %799 = vmatpush.msra.mxu0 %v242
  %800 = vmatpush.msra.mxu0 %v241
  %801 = vmatpush.msra.mxu0 %v240
  %802 = vmatpush.msra.mxu0 %v239
  %803 = vmatpush.msra.mxu0 %v238
  %804 = vmatpush.msra.mxu0 %v237
  %805 = vmatpush.msra.mxu0 %v236
  %806 = vmatmul.f32.gmra.mxu0 %v789
  %v807 = vpop.f32.mrf.mxu0
  %v808 = vadd.f32 0.0, %v807
  %809 = vdwg.mxu0
  %s810 = scalar_lea.vmem %s4, 1152
  %v811 = vld [vmem:[%s810] sm:$0xff]
  %v812 = vld [vmem:[%s810 + $0x8] sm:$0xff]
  %v813 = vld [vmem:[%s810 + $0x10] sm:$0xff]
  %v814 = vld [vmem:[%s810 + $0x18] sm:$0xff]
  %v815 = vld [vmem:[%s810 + $0x20] sm:$0xff]
  %v816 = vld [vmem:[%s810 + $0x28] sm:$0xff]
  %v817 = vld [vmem:[%s810 + $0x30] sm:$0xff]
  %v818 = vld [vmem:[%s810 + $0x38] sm:$0xff]
  %v819 = vld [vmem:[%s810 + $0x40] sm:$0xff]
  %v820 = vld [vmem:[%s810 + $0x48] sm:$0xff]
  %v821 = vld [vmem:[%s810 + $0x50] sm:$0xff]
  %v822 = vld [vmem:[%s810 + $0x58] sm:$0xff]
  %v823 = vld [vmem:[%s810 + $0x60] sm:$0xff]
  %v824 = vld [vmem:[%s810 + $0x68] sm:$0xff]
  %v825 = vld [vmem:[%s810 + $0x70] sm:$0xff]
  %v826 = vld [vmem:[%s810 + $0x78] sm:$0xff]
  %827 = vmatpush.msra.mxu0 %v826
  %828 = vmatpush.msra.mxu0 %v825
  %829 = vmatpush.msra.mxu0 %v824
  %830 = vmatpush.msra.mxu0 %v823
  %831 = vmatpush.msra.mxu0 %v822
  %832 = vmatpush.msra.mxu0 %v821
  %833 = vmatpush.msra.mxu0 %v820
  %834 = vmatpush.msra.mxu0 %v819
  %835 = vmatpush.msra.mxu0 %v818
  %836 = vmatpush.msra.mxu0 %v817
  %837 = vmatpush.msra.mxu0 %v816
  %838 = vmatpush.msra.mxu0 %v815
  %839 = vmatpush.msra.mxu0 %v814
  %840 = vmatpush.msra.mxu0 %v813
  %841 = vmatpush.msra.mxu0 %v812
  %842 = vmatpush.msra.mxu0 %v811
  %843 = vmatmul.f32.gmra.mxu0 %v808
  %v844 = vpop.f32.mrf.mxu0
  %v845 = vadd.f32 0.0, %v844
  %846 = vdwg.mxu0
  %v847 = vadd.f32 %v787, %v845
  %s848 = scalar_lea.vmem %s3, 80
  %v849 = vld [vmem:[%s848] sm:$0xff]
  %850 = vmatpush.msra.mxu0 %v251
  %851 = vmatpush.msra.mxu0 %v250
  %852 = vmatpush.msra.mxu0 %v249
  %853 = vmatpush.msra.mxu0 %v248
  %854 = vmatpush.msra.mxu0 %v247
  %855 = vmatpush.msra.mxu0 %v246
  %856 = vmatpush.msra.mxu0 %v245
  %857 = vmatpush.msra.mxu0 %v244
  %858 = vmatpush.msra.mxu0 %v243
  %859 = vmatpush.msra.mxu0 %v242
  %860 = vmatpush.msra.mxu0 %v241
  %861 = vmatpush.msra.mxu0 %v240
  %862 = vmatpush.msra.mxu0 %v239
  %863 = vmatpush.msra.mxu0 %v238
  %864 = vmatpush.msra.mxu0 %v237
  %865 = vmatpush.msra.mxu0 %v236
  %866 = vmatmul.f32.gmra.mxu0 %v849
  %v867 = vpop.f32.mrf.mxu0
  %v868 = vadd.f32 0.0, %v867
  %869 = vdwg.mxu0
  %s870 = scalar_lea.vmem %s4, 1280
  %v871 = vld [vmem:[%s870] sm:$0xff]
  %v872 = vld [vmem:[%s870 + $0x8] sm:$0xff]
  %v873 = vld [vmem:[%s870 + $0x10] sm:$0xff]
  %v874 = vld [vmem:[%s870 + $0x18] sm:$0xff]
  %v875 = vld [vmem:[%s870 + $0x20] sm:$0xff]
  %v876 = vld [vmem:[%s870 + $0x28] sm:$0xff]
  %v877 = vld [vmem:[%s870 + $0x30] sm:$0xff]
  %v878 = vld [vmem:[%s870 + $0x38] sm:$0xff]
  %v879 = vld [vmem:[%s870 + $0x40] sm:$0xff]
  %v880 = vld [vmem:[%s870 + $0x48] sm:$0xff]
  %v881 = vld [vmem:[%s870 + $0x50] sm:$0xff]
  %v882 = vld [vmem:[%s870 + $0x58] sm:$0xff]
  %v883 = vld [vmem:[%s870 + $0x60] sm:$0xff]
  %v884 = vld [vmem:[%s870 + $0x68] sm:$0xff]
  %v885 = vld [vmem:[%s870 + $0x70] sm:$0xff]
  %v886 = vld [vmem:[%s870 + $0x78] sm:$0xff]
  %887 = vmatpush.msra.mxu0 %v886
  %888 = vmatpush.msra.mxu0 %v885
  %889 = vmatpush.msra.mxu0 %v884
  %890 = vmatpush.msra.mxu0 %v883
  %891 = vmatpush.msra.mxu0 %v882
  %892 = vmatpush.msra.mxu0 %v881
  %893 = vmatpush.msra.mxu0 %v880
  %894 = vmatpush.msra.mxu0 %v879
  %895 = vmatpush.msra.mxu0 %v878
  %896 = vmatpush.msra.mxu0 %v877
  %897 = vmatpush.msra.mxu0 %v876
  %898 = vmatpush.msra.mxu0 %v875
  %899 = vmatpush.msra.mxu0 %v874
  %900 = vmatpush.msra.mxu0 %v873
  %901 = vmatpush.msra.mxu0 %v872
  %902 = vmatpush.msra.mxu0 %v871
  %903 = vmatmul.f32.gmra.mxu0 %v868
  %v904 = vpop.f32.mrf.mxu0
  %v905 = vadd.f32 0.0, %v904
  %906 = vdwg.mxu0
  %v907 = vadd.f32 %v847, %v905
  %s908 = scalar_lea.vmem %s3, 88
  %v909 = vld [vmem:[%s908] sm:$0xff]
  %910 = vmatpush.msra.mxu0 %v251
  %911 = vmatpush.msra.mxu0 %v250
  %912 = vmatpush.msra.mxu0 %v249
  %913 = vmatpush.msra.mxu0 %v248
  %914 = vmatpush.msra.mxu0 %v247
  %915 = vmatpush.msra.mxu0 %v246
  %916 = vmatpush.msra.mxu0 %v245
  %917 = vmatpush.msra.mxu0 %v244
  %918 = vmatpush.msra.mxu0 %v243
  %919 = vmatpush.msra.mxu0 %v242
  %920 = vmatpush.msra.mxu0 %v241
  %921 = vmatpush.msra.mxu0 %v240
  %922 = vmatpush.msra.mxu0 %v239
  %923 = vmatpush.msra.mxu0 %v238
  %924 = vmatpush.msra.mxu0 %v237
  %925 = vmatpush.msra.mxu0 %v236
  %926 = vmatmul.f32.gmra.mxu0 %v909
  %v927 = vpop.f32.mrf.mxu0
  %v928 = vadd.f32 0.0, %v927
  %929 = vdwg.mxu0
  %s930 = scalar_lea.vmem %s4, 1408
  %v931 = vld [vmem:[%s930] sm:$0xff]
  %v932 = vld [vmem:[%s930 + $0x8] sm:$0xff]
  %v933 = vld [vmem:[%s930 + $0x10] sm:$0xff]
  %v934 = vld [vmem:[%s930 + $0x18] sm:$0xff]
  %v935 = vld [vmem:[%s930 + $0x20] sm:$0xff]
  %v936 = vld [vmem:[%s930 + $0x28] sm:$0xff]
  %v937 = vld [vmem:[%s930 + $0x30] sm:$0xff]
  %v938 = vld [vmem:[%s930 + $0x38] sm:$0xff]
  %v939 = vld [vmem:[%s930 + $0x40] sm:$0xff]
  %v940 = vld [vmem:[%s930 + $0x48] sm:$0xff]
  %v941 = vld [vmem:[%s930 + $0x50] sm:$0xff]
  %v942 = vld [vmem:[%s930 + $0x58] sm:$0xff]
  %v943 = vld [vmem:[%s930 + $0x60] sm:$0xff]
  %v944 = vld [vmem:[%s930 + $0x68] sm:$0xff]
  %v945 = vld [vmem:[%s930 + $0x70] sm:$0xff]
  %v946 = vld [vmem:[%s930 + $0x78] sm:$0xff]
  %947 = vmatpush.msra.mxu0 %v946
  %948 = vmatpush.msra.mxu0 %v945
  %949 = vmatpush.msra.mxu0 %v944
  %950 = vmatpush.msra.mxu0 %v943
  %951 = vmatpush.msra.mxu0 %v942
  %952 = vmatpush.msra.mxu0 %v941
  %953 = vmatpush.msra.mxu0 %v940
  %954 = vmatpush.msra.mxu0 %v939
  %955 = vmatpush.msra.mxu0 %v938
  %956 = vmatpush.msra.mxu0 %v937
  %957 = vmatpush.msra.mxu0 %v936
  %958 = vmatpush.msra.mxu0 %v935
  %959 = vmatpush.msra.mxu0 %v934
  %960 = vmatpush.msra.mxu0 %v933
  %961 = vmatpush.msra.mxu0 %v932
  %962 = vmatpush.msra.mxu0 %v931
  %963 = vmatmul.f32.gmra.mxu0 %v928
  %v964 = vpop.f32.mrf.mxu0
  %v965 = vadd.f32 0.0, %v964
  %966 = vdwg.mxu0
  %v967 = vadd.f32 %v907, %v965
  %s968 = scalar_lea.vmem %s3, 96
  %v969 = vld [vmem:[%s968] sm:$0xff]
  %970 = vmatpush.msra.mxu0 %v251
  %971 = vmatpush.msra.mxu0 %v250
  %972 = vmatpush.msra.mxu0 %v249
  %973 = vmatpush.msra.mxu0 %v248
  %974 = vmatpush.msra.mxu0 %v247
  %975 = vmatpush.msra.mxu0 %v246
  %976 = vmatpush.msra.mxu0 %v245
  %977 = vmatpush.msra.mxu0 %v244
  %978 = vmatpush.msra.mxu0 %v243
  %979 = vmatpush.msra.mxu0 %v242
  %980 = vmatpush.msra.mxu0 %v241
  %981 = vmatpush.msra.mxu0 %v240
  %982 = vmatpush.msra.mxu0 %v239
  %983 = vmatpush.msra.mxu0 %v238
  %984 = vmatpush.msra.mxu0 %v237
  %985 = vmatpush.msra.mxu0 %v236
  %986 = vmatmul.f32.gmra.mxu0 %v969
  %v987 = vpop.f32.mrf.mxu0
  %v988 = vadd.f32 0.0, %v987
  %989 = vdwg.mxu0
  %s990 = scalar_lea.vmem %s4, 1536
  %v991 = vld [vmem:[%s990] sm:$0xff]
  %v992 = vld [vmem:[%s990 + $0x8] sm:$0xff]
  %v993 = vld [vmem:[%s990 + $0x10] sm:$0xff]
  %v994 = vld [vmem:[%s990 + $0x18] sm:$0xff]
  %v995 = vld [vmem:[%s990 + $0x20] sm:$0xff]
  %v996 = vld [vmem:[%s990 + $0x28] sm:$0xff]
  %v997 = vld [vmem:[%s990 + $0x30] sm:$0xff]
  %v998 = vld [vmem:[%s990 + $0x38] sm:$0xff]
  %v999 = vld [vmem:[%s990 + $0x40] sm:$0xff]
  %v1000 = vld [vmem:[%s990 + $0x48] sm:$0xff]
  %v1001 = vld [vmem:[%s990 + $0x50] sm:$0xff]
  %v1002 = vld [vmem:[%s990 + $0x58] sm:$0xff]
  %v1003 = vld [vmem:[%s990 + $0x60] sm:$0xff]
  %v1004 = vld [vmem:[%s990 + $0x68] sm:$0xff]
  %v1005 = vld [vmem:[%s990 + $0x70] sm:$0xff]
  %v1006 = vld [vmem:[%s990 + $0x78] sm:$0xff]
  %1007 = vmatpush.msra.mxu0 %v1006
  %1008 = vmatpush.msra.mxu0 %v1005
  %1009 = vmatpush.msra.mxu0 %v1004
  %1010 = vmatpush.msra.mxu0 %v1003
  %1011 = vmatpush.msra.mxu0 %v1002
  %1012 = vmatpush.msra.mxu0 %v1001
  %1013 = vmatpush.msra.mxu0 %v1000
  %1014 = vmatpush.msra.mxu0 %v999
  %1015 = vmatpush.msra.mxu0 %v998
  %1016 = vmatpush.msra.mxu0 %v997
  %1017 = vmatpush.msra.mxu0 %v996
  %1018 = vmatpush.msra.mxu0 %v995
  %1019 = vmatpush.msra.mxu0 %v994
  %1020 = vmatpush.msra.mxu0 %v993
  %1021 = vmatpush.msra.mxu0 %v992
  %1022 = vmatpush.msra.mxu0 %v991
  %1023 = vmatmul.f32.gmra.mxu0 %v988
  %v1024 = vpop.f32.mrf.mxu0
  %v1025 = vadd.f32 0.0, %v1024
  %1026 = vdwg.mxu0
  %v1027 = vadd.f32 %v967, %v1025
  %s1028 = scalar_lea.vmem %s3, 104
  %v1029 = vld [vmem:[%s1028] sm:$0xff]
  %1030 = vmatpush.msra.mxu0 %v251
  %1031 = vmatpush.msra.mxu0 %v250
  %1032 = vmatpush.msra.mxu0 %v249
  %1033 = vmatpush.msra.mxu0 %v248
  %1034 = vmatpush.msra.mxu0 %v247
  %1035 = vmatpush.msra.mxu0 %v246
  %1036 = vmatpush.msra.mxu0 %v245
  %1037 = vmatpush.msra.mxu0 %v244
  %1038 = vmatpush.msra.mxu0 %v243
  %1039 = vmatpush.msra.mxu0 %v242
  %1040 = vmatpush.msra.mxu0 %v241
  %1041 = vmatpush.msra.mxu0 %v240
  %1042 = vmatpush.msra.mxu0 %v239
  %1043 = vmatpush.msra.mxu0 %v238
  %1044 = vmatpush.msra.mxu0 %v237
  %1045 = vmatpush.msra.mxu0 %v236
  %1046 = vmatmul.f32.gmra.mxu0 %v1029
  %v1047 = vpop.f32.mrf.mxu0
  %v1048 = vadd.f32 0.0, %v1047
  %1049 = vdwg.mxu0
  %s1050 = scalar_lea.vmem %s4, 1664
  %v1051 = vld [vmem:[%s1050] sm:$0xff]
  %v1052 = vld [vmem:[%s1050 + $0x8] sm:$0xff]
  %v1053 = vld [vmem:[%s1050 + $0x10] sm:$0xff]
  %v1054 = vld [vmem:[%s1050 + $0x18] sm:$0xff]
  %v1055 = vld [vmem:[%s1050 + $0x20] sm:$0xff]
  %v1056 = vld [vmem:[%s1050 + $0x28] sm:$0xff]
  %v1057 = vld [vmem:[%s1050 + $0x30] sm:$0xff]
  %v1058 = vld [vmem:[%s1050 + $0x38] sm:$0xff]
  %v1059 = vld [vmem:[%s1050 + $0x40] sm:$0xff]
  %v1060 = vld [vmem:[%s1050 + $0x48] sm:$0xff]
  %v1061 = vld [vmem:[%s1050 + $0x50] sm:$0xff]
  %v1062 = vld [vmem:[%s1050 + $0x58] sm:$0xff]
  %v1063 = vld [vmem:[%s1050 + $0x60] sm:$0xff]
  %v1064 = vld [vmem:[%s1050 + $0x68] sm:$0xff]
  %v1065 = vld [vmem:[%s1050 + $0x70] sm:$0xff]
  %v1066 = vld [vmem:[%s1050 + $0x78] sm:$0xff]
  %1067 = vmatpush.msra.mxu0 %v1066
  %1068 = vmatpush.msra.mxu0 %v1065
  %1069 = vmatpush.msra.mxu0 %v1064
  %1070 = vmatpush.msra.mxu0 %v1063
  %1071 = vmatpush.msra.mxu0 %v1062
  %1072 = vmatpush.msra.mxu0 %v1061
  %1073 = vmatpush.msra.mxu0 %v1060
  %1074 = vmatpush.msra.mxu0 %v1059
  %1075 = vmatpush.msra.mxu0 %v1058
  %1076 = vmatpush.msra.mxu0 %v1057
  %1077 = vmatpush.msra.mxu0 %v1056
  %1078 = vmatpush.msra.mxu0 %v1055
  %1079 = vmatpush.msra.mxu0 %v1054
  %1080 = vmatpush.msra.mxu0 %v1053
  %1081 = vmatpush.msra.mxu0 %v1052
  %1082 = vmatpush.msra.mxu0 %v1051
  %1083 = vmatmul.f32.gmra.mxu0 %v1048
  %v1084 = vpop.f32.mrf.mxu0
  %v1085 = vadd.f32 0.0, %v1084
  %1086 = vdwg.mxu0
  %v1087 = vadd.f32 %v1027, %v1085
  %s1088 = scalar_lea.vmem %s3, 112
  %v1089 = vld [vmem:[%s1088] sm:$0xff]
  %1090 = vmatpush.msra.mxu0 %v251
  %1091 = vmatpush.msra.mxu0 %v250
  %1092 = vmatpush.msra.mxu0 %v249
  %1093 = vmatpush.msra.mxu0 %v248
  %1094 = vmatpush.msra.mxu0 %v247
  %1095 = vmatpush.msra.mxu0 %v246
  %1096 = vmatpush.msra.mxu0 %v245
  %1097 = vmatpush.msra.mxu0 %v244
  %1098 = vmatpush.msra.mxu0 %v243
  %1099 = vmatpush.msra.mxu0 %v242
  %1100 = vmatpush.msra.mxu0 %v241
  %1101 = vmatpush.msra.mxu0 %v240
  %1102 = vmatpush.msra.mxu0 %v239
  %1103 = vmatpush.msra.mxu0 %v238
  %1104 = vmatpush.msra.mxu0 %v237
  %1105 = vmatpush.msra.mxu0 %v236
  %1106 = vmatmul.f32.gmra.mxu0 %v1089
  %v1107 = vpop.f32.mrf.mxu0
  %v1108 = vadd.f32 0.0, %v1107
  %1109 = vdwg.mxu0
  %s1110 = scalar_lea.vmem %s4, 1792
  %v1111 = vld [vmem:[%s1110] sm:$0xff]
  %v1112 = vld [vmem:[%s1110 + $0x8] sm:$0xff]
  %v1113 = vld [vmem:[%s1110 + $0x10] sm:$0xff]
  %v1114 = vld [vmem:[%s1110 + $0x18] sm:$0xff]
  %v1115 = vld [vmem:[%s1110 + $0x20] sm:$0xff]
  %v1116 = vld [vmem:[%s1110 + $0x28] sm:$0xff]
  %v1117 = vld [vmem:[%s1110 + $0x30] sm:$0xff]
  %v1118 = vld [vmem:[%s1110 + $0x38] sm:$0xff]
  %v1119 = vld [vmem:[%s1110 + $0x40] sm:$0xff]
  %v1120 = vld [vmem:[%s1110 + $0x48] sm:$0xff]
  %v1121 = vld [vmem:[%s1110 + $0x50] sm:$0xff]
  %v1122 = vld [vmem:[%s1110 + $0x58] sm:$0xff]
  %v1123 = vld [vmem:[%s1110 + $0x60] sm:$0xff]
  %v1124 = vld [vmem:[%s1110 + $0x68] sm:$0xff]
  %v1125 = vld [vmem:[%s1110 + $0x70] sm:$0xff]
  %v1126 = vld [vmem:[%s1110 + $0x78] sm:$0xff]
  %1127 = vmatpush.msra.mxu0 %v1126
  %1128 = vmatpush.msra.mxu0 %v1125
  %1129 = vmatpush.msra.mxu0 %v1124
  %1130 = vmatpush.msra.mxu0 %v1123
  %1131 = vmatpush.msra.mxu0 %v1122
  %1132 = vmatpush.msra.mxu0 %v1121
  %1133 = vmatpush.msra.mxu0 %v1120
  %1134 = vmatpush.msra.mxu0 %v1119
  %1135 = vmatpush.msra.mxu0 %v1118
  %1136 = vmatpush.msra.mxu0 %v1117
  %1137 = vmatpush.msra.mxu0 %v1116
  %1138 = vmatpush.msra.mxu0 %v1115
  %1139 = vmatpush.msra.mxu0 %v1114
  %1140 = vmatpush.msra.mxu0 %v1113
  %1141 = vmatpush.msra.mxu0 %v1112
  %1142 = vmatpush.msra.mxu0 %v1111
  %1143 = vmatmul.f32.gmra.mxu0 %v1108
  %v1144 = vpop.f32.mrf.mxu0
  %v1145 = vadd.f32 0.0, %v1144
  %1146 = vdwg.mxu0
  %v1147 = vadd.f32 %v1087, %v1145
  %s1148 = scalar_lea.vmem %s3, 120
  %v1149 = vld [vmem:[%s1148] sm:$0xff]
  %1150 = vmatpush.msra.mxu0 %v251
  %1151 = vmatpush.msra.mxu0 %v250
  %1152 = vmatpush.msra.mxu0 %v249
  %1153 = vmatpush.msra.mxu0 %v248
  %1154 = vmatpush.msra.mxu0 %v247
  %1155 = vmatpush.msra.mxu0 %v246
  %1156 = vmatpush.msra.mxu0 %v245
  %1157 = vmatpush.msra.mxu0 %v244
  %1158 = vmatpush.msra.mxu0 %v243
  %1159 = vmatpush.msra.mxu0 %v242
  %1160 = vmatpush.msra.mxu0 %v241
  %1161 = vmatpush.msra.mxu0 %v240
  %1162 = vmatpush.msra.mxu0 %v239
  %1163 = vmatpush.msra.mxu0 %v238
  %1164 = vmatpush.msra.mxu0 %v237
  %1165 = vmatpush.msra.mxu0 %v236
  %1166 = vmatmul.f32.gmra.mxu0 %v1149
  %v1167 = vpop.f32.mrf.mxu0
  %v1168 = vadd.f32 0.0, %v1167
  %1169 = vdwg.mxu0
  %s1170 = scalar_lea.vmem %s4, 1920
  %v1171 = vld [vmem:[%s1170] sm:$0xff]
  %v1172 = vld [vmem:[%s1170 + $0x8] sm:$0xff]
  %v1173 = vld [vmem:[%s1170 + $0x10] sm:$0xff]
  %v1174 = vld [vmem:[%s1170 + $0x18] sm:$0xff]
  %v1175 = vld [vmem:[%s1170 + $0x20] sm:$0xff]
  %v1176 = vld [vmem:[%s1170 + $0x28] sm:$0xff]
  %v1177 = vld [vmem:[%s1170 + $0x30] sm:$0xff]
  %v1178 = vld [vmem:[%s1170 + $0x38] sm:$0xff]
  %v1179 = vld [vmem:[%s1170 + $0x40] sm:$0xff]
  %v1180 = vld [vmem:[%s1170 + $0x48] sm:$0xff]
  %v1181 = vld [vmem:[%s1170 + $0x50] sm:$0xff]
  %v1182 = vld [vmem:[%s1170 + $0x58] sm:$0xff]
  %v1183 = vld [vmem:[%s1170 + $0x60] sm:$0xff]
  %v1184 = vld [vmem:[%s1170 + $0x68] sm:$0xff]
  %v1185 = vld [vmem:[%s1170 + $0x70] sm:$0xff]
  %v1186 = vld [vmem:[%s1170 + $0x78] sm:$0xff]
  %1187 = vmatpush.msra.mxu0 %v1186
  %1188 = vmatpush.msra.mxu0 %v1185
  %1189 = vmatpush.msra.mxu0 %v1184
  %1190 = vmatpush.msra.mxu0 %v1183
  %1191 = vmatpush.msra.mxu0 %v1182
  %1192 = vmatpush.msra.mxu0 %v1181
  %1193 = vmatpush.msra.mxu0 %v1180
  %1194 = vmatpush.msra.mxu0 %v1179
  %1195 = vmatpush.msra.mxu0 %v1178
  %1196 = vmatpush.msra.mxu0 %v1177
  %1197 = vmatpush.msra.mxu0 %v1176
  %1198 = vmatpush.msra.mxu0 %v1175
  %1199 = vmatpush.msra.mxu0 %v1174
  %1200 = vmatpush.msra.mxu0 %v1173
  %1201 = vmatpush.msra.mxu0 %v1172
  %1202 = vmatpush.msra.mxu0 %v1171
  %1203 = vmatmul.f32.gmra.mxu0 %v1168
  %v1204 = vpop.f32.mrf.mxu0
  %v1205 = vadd.f32 0.0, %v1204
  %1206 = vdwg.mxu0
  %v1207 = vadd.f32 %v1147, %v1205
  %v1208 = vld [vmem:[%s5] sm:$0x1]
  %v1210 = vperm.slane %v1208, 0
  %v1212 = vadd.f32 %v1207, %v1210
  %v1213 = vmax.f32 %v1212, 0.0
  %v1214 = vld [vmem:[%s6] sm:$0x3]
  %vm1215 = vcmask 64512
  %v1217 = vsel %vm1215, %v1214, 0
  %1219 = vmatpush.msra.mxu0 0.0
  %1220 = vmatpush.msra.mxu0 0.0
  %1221 = vmatpush.msra.mxu0 0.0
  %1222 = vmatpush.msra.mxu0 0.0
  %1223 = vmatpush.msra.mxu0 0.0
  %1224 = vmatpush.msra.mxu0 0.0
  %1225 = vmatpush.msra.mxu0 0.0
  %1226 = vmatpush.msra.mxu0 0.0
  %1227 = vmatpush.msra.mxu0 0.0
  %1228 = vmatpush.msra.mxu0 0.0
  %1229 = vmatpush.msra.mxu0 0.0
  %1230 = vmatpush.msra.mxu0 0.0
  %1231 = vmatpush.msra.mxu0 0.0
  %1232 = vmatpush.msra.mxu0 0.0
  %1233 = vmatpush.msra.mxu0 0.0
  %1234 = vmatpush.msra.mxu0 %v1213
  %1235 = vmatmul.f32.gmra.mxu0 %v1217
  %v1236 = vpop.f32.mrf.mxu0
  %v1237 = vadd.f32 0.0, %v1236
  %1238 = vdwg.mxu0
  %v1239 = vld [vmem:[%s7] sm:$0xff]
  %v1240 = vld [vmem:[%s7 + $0x8] sm:$0xff]
  %v1241 = vld [vmem:[%s7 + $0x10] sm:$0xff]
  %v1242 = vld [vmem:[%s7 + $0x18] sm:$0xff]
  %v1243 = vld [vmem:[%s7 + $0x20] sm:$0xff]
  %v1244 = vld [vmem:[%s7 + $0x28] sm:$0xff]
  %v1245 = vld [vmem:[%s7 + $0x30] sm:$0xff]
  %v1246 = vld [vmem:[%s7 + $0x38] sm:$0xff]
  %v1247 = vld [vmem:[%s7 + $0x40] sm:$0xff]
  %v1248 = vld [vmem:[%s7 + $0x48] sm:$0xff]
  %v1249 = vld [vmem:[%s7 + $0x50] sm:$0xff]
  %v1250 = vld [vmem:[%s7 + $0x58] sm:$0xff]
  %v1251 = vld [vmem:[%s7 + $0x60] sm:$0xff]
  %v1252 = vld [vmem:[%s7 + $0x68] sm:$0xff]
  %v1253 = vld [vmem:[%s7 + $0x70] sm:$0xff]
  %v1254 = vld [vmem:[%s7 + $0x78] sm:$0xff]
  %v1255 = vld [vmem:[%s7 + $0x80] sm:$0xff]
  %v1256 = vld [vmem:[%s7 + $0x88] sm:$0xff]
  %v1257 = vld [vmem:[%s7 + $0x90] sm:$0xff]
  %v1258 = vld [vmem:[%s7 + $0x98] sm:$0xff]
  %v1259 = vld [vmem:[%s7 + $0xa0] sm:$0xff]
  %v1260 = vld [vmem:[%s7 + $0xa8] sm:$0xff]
  %v1261 = vld [vmem:[%s7 + $0xb0] sm:$0xff]
  %v1262 = vld [vmem:[%s7 + $0xb8] sm:$0xff]
  %v1263 = vld [vmem:[%s7 + $0xc0] sm:$0xff]
  %v1264 = vld [vmem:[%s7 + $0xc8] sm:$0xff]
  %v1265 = vld [vmem:[%s7 + $0xd0] sm:$0xff]
  %v1266 = vld [vmem:[%s7 + $0xd8] sm:$0xff]
  %v1267 = vld [vmem:[%s7 + $0xe0] sm:$0xff]
  %v1268 = vld [vmem:[%s7 + $0xe8] sm:$0xff]
  %v1269 = vld [vmem:[%s7 + $0xf0] sm:$0xff]
  %v1270 = vld [vmem:[%s7 + $0xf8] sm:$0xff]
  %s1271 = scalar_lea.vmem %s6, 2
  %v1272 = vld [vmem:[%s1271] sm:$0x3]
  %v1274 = vsel %vm1215, %v1272, 0
  %1276 = vmatpush.msra.mxu0 0.0
  %1277 = vmatpush.msra.mxu0 0.0
  %1278 = vmatpush.msra.mxu0 0.0
  %1279 = vmatpush.msra.mxu0 0.0
  %1280 = vmatpush.msra.mxu0 0.0
  %1281 = vmatpush.msra.mxu0 0.0
  %1282 = vmatpush.msra.mxu0 0.0
  %1283 = vmatpush.msra.mxu0 0.0
  %1284 = vmatpush.msra.mxu0 0.0
  %1285 = vmatpush.msra.mxu0 0.0
  %1286 = vmatpush.msra.mxu0 0.0
  %1287 = vmatpush.msra.mxu0 0.0
  %1288 = vmatpush.msra.mxu0 0.0
  %1289 = vmatpush.msra.mxu0 0.0
  %1290 = vmatpush.msra.mxu0 0.0
  %1291 = vmatpush.msra.mxu0 %v1213
  %1292 = vmatmul.f32.gmra.mxu0 %v1274
  %v1293 = vpop.f32.mrf.mxu0
  %v1294 = vadd.f32 0.0, %v1293
  %1295 = vdwg.mxu0
  %s1296 = scalar_lea.vmem %s7, 256
  %v1297 = vld [vmem:[%s1296] sm:$0xff]
  %v1298 = vld [vmem:[%s1296 + $0x8] sm:$0xff]
  %v1299 = vld [vmem:[%s1296 + $0x10] sm:$0xff]
  %v1300 = vld [vmem:[%s1296 + $0x18] sm:$0xff]
  %v1301 = vld [vmem:[%s1296 + $0x20] sm:$0xff]
  %v1302 = vld [vmem:[%s1296 + $0x28] sm:$0xff]
  %v1303 = vld [vmem:[%s1296 + $0x30] sm:$0xff]
  %v1304 = vld [vmem:[%s1296 + $0x38] sm:$0xff]
  %v1305 = vld [vmem:[%s1296 + $0x40] sm:$0xff]
  %v1306 = vld [vmem:[%s1296 + $0x48] sm:$0xff]
  %v1307 = vld [vmem:[%s1296 + $0x50] sm:$0xff]
  %v1308 = vld [vmem:[%s1296 + $0x58] sm:$0xff]
  %v1309 = vld [vmem:[%s1296 + $0x60] sm:$0xff]
  %v1310 = vld [vmem:[%s1296 + $0x68] sm:$0xff]
  %v1311 = vld [vmem:[%s1296 + $0x70] sm:$0xff]
  %v1312 = vld [vmem:[%s1296 + $0x78] sm:$0xff]
  %v1313 = vld [vmem:[%s1296 + $0x80] sm:$0xff]
  %v1314 = vld [vmem:[%s1296 + $0x88] sm:$0xff]
  %v1315 = vld [vmem:[%s1296 + $0x90] sm:$0xff]
  %v1316 = vld [vmem:[%s1296 + $0x98] sm:$0xff]
  %v1317 = vld [vmem:[%s1296 + $0xa0] sm:$0xff]
  %v1318 = vld [vmem:[%s1296 + $0xa8] sm:$0xff]
  %v1319 = vld [vmem:[%s1296 + $0xb0] sm:$0xff]
  %v1320 = vld [vmem:[%s1296 + $0xb8] sm:$0xff]
  %v1321 = vld [vmem:[%s1296 + $0xc0] sm:$0xff]
  %v1322 = vld [vmem:[%s1296 + $0xc8] sm:$0xff]
  %v1323 = vld [vmem:[%s1296 + $0xd0] sm:$0xff]
  %v1324 = vld [vmem:[%s1296 + $0xd8] sm:$0xff]
  %v1325 = vld [vmem:[%s1296 + $0xe0] sm:$0xff]
  %v1326 = vld [vmem:[%s1296 + $0xe8] sm:$0xff]
  %v1327 = vld [vmem:[%s1296 + $0xf0] sm:$0xff]
  %v1328 = vld [vmem:[%s1296 + $0xf8] sm:$0xff]
  %1329 = vmatpush.msra.mxu0 %v1327
  %1330 = vmatpush.msra.mxu0 %v1325
  %1331 = vmatpush.msra.mxu0 %v1323
  %1332 = vmatpush.msra.mxu0 %v1321
  %1333 = vmatpush.msra.mxu0 %v1319
  %1334 = vmatpush.msra.mxu0 %v1317
  %1335 = vmatpush.msra.mxu0 %v1315
  %1336 = vmatpush.msra.mxu0 %v1313
  %1337 = vmatpush.msra.mxu0 %v1311
  %1338 = vmatpush.msra.mxu0 %v1309
  %1339 = vmatpush.msra.mxu0 %v1307
  %1340 = vmatpush.msra.mxu0 %v1305
  %1341 = vmatpush.msra.mxu0 %v1303
  %1342 = vmatpush.msra.mxu0 %v1301
  %1343 = vmatpush.msra.mxu0 %v1299
  %1344 = vmatpush.msra.mxu0 %v1297
  %1345 = vmatmul.f32.gmra.mxu0 %v1294
  %v1346 = vpop.f32.mrf.mxu0
  %v1347 = vadd.f32 0.0, %v1346
  %1348 = vdwg.mxu0
  %1349 = vmatpush.msra.mxu0 %v1328
  %1350 = vmatpush.msra.mxu0 %v1326
  %1351 = vmatpush.msra.mxu0 %v1324
  %1352 = vmatpush.msra.mxu0 %v1322
  %1353 = vmatpush.msra.mxu0 %v1320
  %1354 = vmatpush.msra.mxu0 %v1318
  %1355 = vmatpush.msra.mxu0 %v1316
  %1356 = vmatpush.msra.mxu0 %v1314
  %1357 = vmatpush.msra.mxu0 %v1312
  %1358 = vmatpush.msra.mxu0 %v1310
  %1359 = vmatpush.msra.mxu0 %v1308
  %1360 = vmatpush.msra.mxu0 %v1306
  %1361 = vmatpush.msra.mxu0 %v1304
  %1362 = vmatpush.msra.mxu0 %v1302
  %1363 = vmatpush.msra.mxu0 %v1300
  %1364 = vmatpush.msra.mxu0 %v1298
  %1365 = vmatmul.f32.gmra.mxu0 %v1294
  %v1366 = vpop.f32.mrf.mxu0
  %v1367 = vadd.f32 0.0, %v1366
  %1368 = vdwg.mxu0
  %1369 = vmatpush.msra.mxu0 %v1269
  %1370 = vmatpush.msra.mxu0 %v1267
  %1371 = vmatpush.msra.mxu0 %v1265
  %1372 = vmatpush.msra.mxu0 %v1263
  %1373 = vmatpush.msra.mxu0 %v1261
  %1374 = vmatpush.msra.mxu0 %v1259
  %1375 = vmatpush.msra.mxu0 %v1257
  %1376 = vmatpush.msra.mxu0 %v1255
  %1377 = vmatpush.msra.mxu0 %v1253
  %1378 = vmatpush.msra.mxu0 %v1251
  %1379 = vmatpush.msra.mxu0 %v1249
  %1380 = vmatpush.msra.mxu0 %v1247
  %1381 = vmatpush.msra.mxu0 %v1245
  %1382 = vmatpush.msra.mxu0 %v1243
  %1383 = vmatpush.msra.mxu0 %v1241
  %1384 = vmatpush.msra.mxu0 %v1239
  %1385 = vmatmul.f32.gmra.mxu0 %v1237
  %v1386 = vpop.f32.mrf.mxu0
  %v1387 = vadd.f32 %v1347, %v1386
  %1388 = vdwg.mxu0
  %1389 = vmatpush.msra.mxu0 %v1270
  %1390 = vmatpush.msra.mxu0 %v1268
  %1391 = vmatpush.msra.mxu0 %v1266
  %1392 = vmatpush.msra.mxu0 %v1264
  %1393 = vmatpush.msra.mxu0 %v1262
  %1394 = vmatpush.msra.mxu0 %v1260
  %1395 = vmatpush.msra.mxu0 %v1258
  %1396 = vmatpush.msra.mxu0 %v1256
  %1397 = vmatpush.msra.mxu0 %v1254
  %1398 = vmatpush.msra.mxu0 %v1252
  %1399 = vmatpush.msra.mxu0 %v1250
  %1400 = vmatpush.msra.mxu0 %v1248
  %1401 = vmatpush.msra.mxu0 %v1246
  %1402 = vmatpush.msra.mxu0 %v1244
  %1403 = vmatpush.msra.mxu0 %v1242
  %1404 = vmatpush.msra.mxu0 %v1240
  %1405 = vmatmul.f32.gmra.mxu0 %v1237
  %v1406 = vpop.f32.mrf.mxu0
  %v1407 = vadd.f32 %v1367, %v1406
  %1408 = vdwg.mxu0
  %s1409 = scalar_lea.vmem %s6, 4
  %v1410 = vld [vmem:[%s1409] sm:$0x3]
  %v1412 = vsel %vm1215, %v1410, 0
  %1414 = vmatpush.msra.mxu0 0.0
  %1415 = vmatpush.msra.mxu0 0.0
  %1416 = vmatpush.msra.mxu0 0.0
  %1417 = vmatpush.msra.mxu0 0.0
  %1418 = vmatpush.msra.mxu0 0.0
  %1419 = vmatpush.msra.mxu0 0.0
  %1420 = vmatpush.msra.mxu0 0.0
  %1421 = vmatpush.msra.mxu0 0.0
  %1422 = vmatpush.msra.mxu0 0.0
  %1423 = vmatpush.msra.mxu0 0.0
  %1424 = vmatpush.msra.mxu0 0.0
  %1425 = vmatpush.msra.mxu0 0.0
  %1426 = vmatpush.msra.mxu0 0.0
  %1427 = vmatpush.msra.mxu0 0.0
  %1428 = vmatpush.msra.mxu0 0.0
  %1429 = vmatpush.msra.mxu0 %v1213
  %1430 = vmatmul.f32.gmra.mxu0 %v1412
  %v1431 = vpop.f32.mrf.mxu0
  %v1432 = vadd.f32 0.0, %v1431
  %1433 = vdwg.mxu0
  %s1434 = scalar_lea.vmem %s7, 512
  %v1435 = vld [vmem:[%s1434] sm:$0xff]
  %v1436 = vld [vmem:[%s1434 + $0x8] sm:$0xff]
  %v1437 = vld [vmem:[%s1434 + $0x10] sm:$0xff]
  %v1438 = vld [vmem:[%s1434 + $0x18] sm:$0xff]
  %v1439 = vld [vmem:[%s1434 + $0x20] sm:$0xff]
  %v1440 = vld [vmem:[%s1434 + $0x28] sm:$0xff]
  %v1441 = vld [vmem:[%s1434 + $0x30] sm:$0xff]
  %v1442 = vld [vmem:[%s1434 + $0x38] sm:$0xff]
  %v1443 = vld [vmem:[%s1434 + $0x40] sm:$0xff]
  %v1444 = vld [vmem:[%s1434 + $0x48] sm:$0xff]
  %v1445 = vld [vmem:[%s1434 + $0x50] sm:$0xff]
  %v1446 = vld [vmem:[%s1434 + $0x58] sm:$0xff]
  %v1447 = vld [vmem:[%s1434 + $0x60] sm:$0xff]
  %v1448 = vld [vmem:[%s1434 + $0x68] sm:$0xff]
  %v1449 = vld [vmem:[%s1434 + $0x70] sm:$0xff]
  %v1450 = vld [vmem:[%s1434 + $0x78] sm:$0xff]
  %v1451 = vld [vmem:[%s1434 + $0x80] sm:$0xff]
  %v1452 = vld [vmem:[%s1434 + $0x88] sm:$0xff]
  %v1453 = vld [vmem:[%s1434 + $0x90] sm:$0xff]
  %v1454 = vld [vmem:[%s1434 + $0x98] sm:$0xff]
  %v1455 = vld [vmem:[%s1434 + $0xa0] sm:$0xff]
  %v1456 = vld [vmem:[%s1434 + $0xa8] sm:$0xff]
  %v1457 = vld [vmem:[%s1434 + $0xb0] sm:$0xff]
  %v1458 = vld [vmem:[%s1434 + $0xb8] sm:$0xff]
  %v1459 = vld [vmem:[%s1434 + $0xc0] sm:$0xff]
  %v1460 = vld [vmem:[%s1434 + $0xc8] sm:$0xff]
  %v1461 = vld [vmem:[%s1434 + $0xd0] sm:$0xff]
  %v1462 = vld [vmem:[%s1434 + $0xd8] sm:$0xff]
  %v1463 = vld [vmem:[%s1434 + $0xe0] sm:$0xff]
  %v1464 = vld [vmem:[%s1434 + $0xe8] sm:$0xff]
  %v1465 = vld [vmem:[%s1434 + $0xf0] sm:$0xff]
  %v1466 = vld [vmem:[%s1434 + $0xf8] sm:$0xff]
  %1467 = vmatpush.msra.mxu0 %v1465
  %1468 = vmatpush.msra.mxu0 %v1463
  %1469 = vmatpush.msra.mxu0 %v1461
  %1470 = vmatpush.msra.mxu0 %v1459
  %1471 = vmatpush.msra.mxu0 %v1457
  %1472 = vmatpush.msra.mxu0 %v1455
  %1473 = vmatpush.msra.mxu0 %v1453
  %1474 = vmatpush.msra.mxu0 %v1451
  %1475 = vmatpush.msra.mxu0 %v1449
  %1476 = vmatpush.msra.mxu0 %v1447
  %1477 = vmatpush.msra.mxu0 %v1445
  %1478 = vmatpush.msra.mxu0 %v1443
  %1479 = vmatpush.msra.mxu0 %v1441
  %1480 = vmatpush.msra.mxu0 %v1439
  %1481 = vmatpush.msra.mxu0 %v1437
  %1482 = vmatpush.msra.mxu0 %v1435
  %1483 = vmatmul.f32.gmra.mxu0 %v1432
  %v1484 = vpop.f32.mrf.mxu0
  %v1485 = vadd.f32 0.0, %v1484
  %1486 = vdwg.mxu0
  %1487 = vmatpush.msra.mxu0 %v1466
  %1488 = vmatpush.msra.mxu0 %v1464
  %1489 = vmatpush.msra.mxu0 %v1462
  %1490 = vmatpush.msra.mxu0 %v1460
  %1491 = vmatpush.msra.mxu0 %v1458
  %1492 = vmatpush.msra.mxu0 %v1456
  %1493 = vmatpush.msra.mxu0 %v1454
  %1494 = vmatpush.msra.mxu0 %v1452
  %1495 = vmatpush.msra.mxu0 %v1450
  %1496 = vmatpush.msra.mxu0 %v1448
  %1497 = vmatpush.msra.mxu0 %v1446
  %1498 = vmatpush.msra.mxu0 %v1444
  %1499 = vmatpush.msra.mxu0 %v1442
  %1500 = vmatpush.msra.mxu0 %v1440
  %1501 = vmatpush.msra.mxu0 %v1438
  %1502 = vmatpush.msra.mxu0 %v1436
  %1503 = vmatmul.f32.gmra.mxu0 %v1432
  %v1504 = vpop.f32.mrf.mxu0
  %v1505 = vadd.f32 0.0, %v1504
  %1506 = vdwg.mxu0
  %v1507 = vadd.f32 %v1387, %v1485
  %v1508 = vadd.f32 %v1407, %v1505
  %s1509 = scalar_lea.vmem %s6, 6
  %v1510 = vld [vmem:[%s1509] sm:$0x3]
  %v1512 = vsel %vm1215, %v1510, 0
  %1514 = vmatpush.msra.mxu0 0.0
  %1515 = vmatpush.msra.mxu0 0.0
  %1516 = vmatpush.msra.mxu0 0.0
  %1517 = vmatpush.msra.mxu0 0.0
  %1518 = vmatpush.msra.mxu0 0.0
  %1519 = vmatpush.msra.mxu0 0.0
  %1520 = vmatpush.msra.mxu0 0.0
  %1521 = vmatpush.msra.mxu0 0.0
  %1522 = vmatpush.msra.mxu0 0.0
  %1523 = vmatpush.msra.mxu0 0.0
  %1524 = vmatpush.msra.mxu0 0.0
  %1525 = vmatpush.msra.mxu0 0.0
  %1526 = vmatpush.msra.mxu0 0.0
  %1527 = vmatpush.msra.mxu0 0.0
  %1528 = vmatpush.msra.mxu0 0.0
  %1529 = vmatpush.msra.mxu0 %v1213
  %1530 = vmatmul.f32.gmra.mxu0 %v1512
  %v1531 = vpop.f32.mrf.mxu0
  %v1532 = vadd.f32 0.0, %v1531
  %1533 = vdwg.mxu0
  %s1534 = scalar_lea.vmem %s7, 768
  %v1535 = vld [vmem:[%s1534] sm:$0xff]
  %v1536 = vld [vmem:[%s1534 + $0x8] sm:$0xff]
  %v1537 = vld [vmem:[%s1534 + $0x10] sm:$0xff]
  %v1538 = vld [vmem:[%s1534 + $0x18] sm:$0xff]
  %v1539 = vld [vmem:[%s1534 + $0x20] sm:$0xff]
  %v1540 = vld [vmem:[%s1534 + $0x28] sm:$0xff]
  %v1541 = vld [vmem:[%s1534 + $0x30] sm:$0xff]
  %v1542 = vld [vmem:[%s1534 + $0x38] sm:$0xff]
  %v1543 = vld [vmem:[%s1534 + $0x40] sm:$0xff]
  %v1544 = vld [vmem:[%s1534 + $0x48] sm:$0xff]
  %v1545 = vld [vmem:[%s1534 + $0x50] sm:$0xff]
  %v1546 = vld [vmem:[%s1534 + $0x58] sm:$0xff]
  %v1547 = vld [vmem:[%s1534 + $0x60] sm:$0xff]
  %v1548 = vld [vmem:[%s1534 + $0x68] sm:$0xff]
  %v1549 = vld [vmem:[%s1534 + $0x70] sm:$0xff]
  %v1550 = vld [vmem:[%s1534 + $0x78] sm:$0xff]
  %v1551 = vld [vmem:[%s1534 + $0x80] sm:$0xff]
  %v1552 = vld [vmem:[%s1534 + $0x88] sm:$0xff]
  %v1553 = vld [vmem:[%s1534 + $0x90] sm:$0xff]
  %v1554 = vld [vmem:[%s1534 + $0x98] sm:$0xff]
  %v1555 = vld [vmem:[%s1534 + $0xa0] sm:$0xff]
  %v1556 = vld [vmem:[%s1534 + $0xa8] sm:$0xff]
  %v1557 = vld [vmem:[%s1534 + $0xb0] sm:$0xff]
  %v1558 = vld [vmem:[%s1534 + $0xb8] sm:$0xff]
  %v1559 = vld [vmem:[%s1534 + $0xc0] sm:$0xff]
  %v1560 = vld [vmem:[%s1534 + $0xc8] sm:$0xff]
  %v1561 = vld [vmem:[%s1534 + $0xd0] sm:$0xff]
  %v1562 = vld [vmem:[%s1534 + $0xd8] sm:$0xff]
  %v1563 = vld [vmem:[%s1534 + $0xe0] sm:$0xff]
  %v1564 = vld [vmem:[%s1534 + $0xe8] sm:$0xff]
  %v1565 = vld [vmem:[%s1534 + $0xf0] sm:$0xff]
  %v1566 = vld [vmem:[%s1534 + $0xf8] sm:$0xff]
  %1567 = vmatpush.msra.mxu0 %v1565
  %1568 = vmatpush.msra.mxu0 %v1563
  %1569 = vmatpush.msra.mxu0 %v1561
  %1570 = vmatpush.msra.mxu0 %v1559
  %1571 = vmatpush.msra.mxu0 %v1557
  %1572 = vmatpush.msra.mxu0 %v1555
  %1573 = vmatpush.msra.mxu0 %v1553
  %1574 = vmatpush.msra.mxu0 %v1551
  %1575 = vmatpush.msra.mxu0 %v1549
  %1576 = vmatpush.msra.mxu0 %v1547
  %1577 = vmatpush.msra.mxu0 %v1545
  %1578 = vmatpush.msra.mxu0 %v1543
  %1579 = vmatpush.msra.mxu0 %v1541
  %1580 = vmatpush.msra.mxu0 %v1539
  %1581 = vmatpush.msra.mxu0 %v1537
  %1582 = vmatpush.msra.mxu0 %v1535
  %1583 = vmatmul.f32.gmra.mxu0 %v1532
  %v1584 = vpop.f32.mrf.mxu0
  %v1585 = vadd.f32 0.0, %v1584
  %1586 = vdwg.mxu0
  %1587 = vmatpush.msra.mxu0 %v1566
  %1588 = vmatpush.msra.mxu0 %v1564
  %1589 = vmatpush.msra.mxu0 %v1562
  %1590 = vmatpush.msra.mxu0 %v1560
  %1591 = vmatpush.msra.mxu0 %v1558
  %1592 = vmatpush.msra.mxu0 %v1556
  %1593 = vmatpush.msra.mxu0 %v1554
  %1594 = vmatpush.msra.mxu0 %v1552
  %1595 = vmatpush.msra.mxu0 %v1550
  %1596 = vmatpush.msra.mxu0 %v1548
  %1597 = vmatpush.msra.mxu0 %v1546
  %1598 = vmatpush.msra.mxu0 %v1544
  %1599 = vmatpush.msra.mxu0 %v1542
  %1600 = vmatpush.msra.mxu0 %v1540
  %1601 = vmatpush.msra.mxu0 %v1538
  %1602 = vmatpush.msra.mxu0 %v1536
  %1603 = vmatmul.f32.gmra.mxu0 %v1532
  %v1604 = vpop.f32.mrf.mxu0
  %v1605 = vadd.f32 0.0, %v1604
  %1606 = vdwg.mxu0
  %v1607 = vadd.f32 %v1507, %v1585
  %v1608 = vadd.f32 %v1508, %v1605
  %v1609 = vld [vmem:[%s8] sm:$0x3]
  %v1611 = vperm.slane %v1609, 0
  %v1612 = vperm.slane %v1609, 1
  %v1615 = vadd.f32 %v1607, %v1611
  %v1616 = vadd.f32 %v1608, %v1612
  %v1617 = vmax.f32 %v1615, 0.0
  %v1618 = vmax.f32 %v1616, 0.0
  %v1619 = vld [vmem:[%s9] sm:$0xff]
  %v1620 = vld [vmem:[%s9 + $0x8] sm:$0xff]
  %v1621 = vld [vmem:[%s9 + $0x10] sm:$0xff]
  %v1622 = vld [vmem:[%s9 + $0x18] sm:$0xff]
  %v1623 = vld [vmem:[%s9 + $0x20] sm:$0xff]
  %v1624 = vld [vmem:[%s9 + $0x28] sm:$0xff]
  %v1625 = vld [vmem:[%s9 + $0x30] sm:$0xff]
  %v1626 = vld [vmem:[%s9 + $0x38] sm:$0xff]
  %v1627 = vld [vmem:[%s9 + $0x40] sm:$0xff]
  %v1628 = vld [vmem:[%s9 + $0x48] sm:$0xff]
  %v1629 = vld [vmem:[%s9 + $0x50] sm:$0xff]
  %v1630 = vld [vmem:[%s9 + $0x58] sm:$0xff]
  %v1631 = vld [vmem:[%s9 + $0x60] sm:$0xff]
  %v1632 = vld [vmem:[%s9 + $0x68] sm:$0xff]
  %v1633 = vld [vmem:[%s9 + $0x70] sm:$0xff]
  %v1634 = vld [vmem:[%s9 + $0x78] sm:$0xff]
  %v1635 = vld [vmem:[%s9 + $0x80] sm:$0xff]
  %v1636 = vld [vmem:[%s9 + $0x88] sm:$0xff]
  %v1637 = vld [vmem:[%s9 + $0x90] sm:$0xff]
  %v1638 = vld [vmem:[%s9 + $0x98] sm:$0xff]
  %v1639 = vld [vmem:[%s9 + $0xa0] sm:$0xff]
  %v1640 = vld [vmem:[%s9 + $0xa8] sm:$0xff]
  %v1641 = vld [vmem:[%s9 + $0xb0] sm:$0xff]
  %v1642 = vld [vmem:[%s9 + $0xb8] sm:$0xff]
  %v1643 = vld [vmem:[%s9 + $0xc0] sm:$0xff]
  %v1644 = vld [vmem:[%s9 + $0xc8] sm:$0xff]
  %v1645 = vld [vmem:[%s9 + $0xd0] sm:$0xff]
  %v1646 = vld [vmem:[%s9 + $0xd8] sm:$0xff]
  %v1647 = vld [vmem:[%s9 + $0xe0] sm:$0xff]
  %v1648 = vld [vmem:[%s9 + $0xe8] sm:$0xff]
  %v1649 = vld [vmem:[%s9 + $0xf0] sm:$0xff]
  %v1650 = vld [vmem:[%s9 + $0xf8] sm:$0xff]
  %v1651 = vld [vmem:[%s10] sm:$0x1]
  %v1653 = vperm.slane %v1651, 0
  %1655 = vmatpush.msra.mxu0 %v1634
  %1656 = vmatpush.msra.mxu0 %v1633
  %1657 = vmatpush.msra.mxu0 %v1632
  %1658 = vmatpush.msra.mxu0 %v1631
  %1659 = vmatpush.msra.mxu0 %v1630
  %1660 = vmatpush.msra.mxu0 %v1629
  %1661 = vmatpush.msra.mxu0 %v1628
  %1662 = vmatpush.msra.mxu0 %v1627
  %1663 = vmatpush.msra.mxu0 %v1626
  %1664 = vmatpush.msra.mxu0 %v1625
  %1665 = vmatpush.msra.mxu0 %v1624
  %1666 = vmatpush.msra.mxu0 %v1623
  %1667 = vmatpush.msra.mxu0 %v1622
  %1668 = vmatpush.msra.mxu0 %v1621
  %1669 = vmatpush.msra.mxu0 %v1620
  %1670 = vmatpush.msra.mxu0 %v1619
  %1671 = vmatmul.f32.gmra.mxu0 %v1617
  %v1672 = vpop.f32.mrf.mxu0
  %v1673 = vadd.f32 %v1653, %v1672
  %1674 = vdwg.mxu0
  %1675 = vmatpush.msra.mxu0 %v1650
  %1676 = vmatpush.msra.mxu0 %v1649
  %1677 = vmatpush.msra.mxu0 %v1648
  %1678 = vmatpush.msra.mxu0 %v1647
  %1679 = vmatpush.msra.mxu0 %v1646
  %1680 = vmatpush.msra.mxu0 %v1645
  %1681 = vmatpush.msra.mxu0 %v1644
  %1682 = vmatpush.msra.mxu0 %v1643
  %1683 = vmatpush.msra.mxu0 %v1642
  %1684 = vmatpush.msra.mxu0 %v1641
  %1685 = vmatpush.msra.mxu0 %v1640
  %1686 = vmatpush.msra.mxu0 %v1639
  %1687 = vmatpush.msra.mxu0 %v1638
  %1688 = vmatpush.msra.mxu0 %v1637
  %1689 = vmatpush.msra.mxu0 %v1636
  %1690 = vmatpush.msra.mxu0 %v1635
  %1691 = vmatmul.f32.gmra.mxu0 %v1618
  %v1692 = vpop.f32.mrf.mxu0
  %v1693 = vadd.f32 %v1673, %v1692
  %1694 = vdwg.mxu0
  %v1695 = vsub.f32 0.0, %v1693
  %v1696 = vmul.f32 %v1695, 1.442695
  %v1697 = vpow.pop %v1696
  %v1698 = vadd.f32 %v1697, 1.0
  %v1699 = vrcp.pop %v1698
  %v1700 = vlaneseq
  %v1701 = vand.u32 %v1700, 127
  %vm1702 = vcmp.eq.s32.totalorder %v1701, 0
  %v1703 = vsel %vm1702, %v1699, %v1693
  %1704 = vst [vmem:[%s11] sm:$0x3] %v1703
  // Predicated region
  $region46: #{actor_critic_forward.1} parent=0 // pred_check
    _
  $region47: #{actor_critic_forward.1} parent=0 // pred_check_branch
    %1706 = sbr.rel (0) target = $region49
  $region48: #{actor_critic_forward.1} parent=0 // pred_region
    _
  $region49: #{actor_critic_forward.1} parent=0 // pred_fallthru
    _
  // Predicated region
  $region50: #{actor_critic_forward.1} parent=0 // pred_check
    _
  $region51: #{actor_critic_forward.1} parent=0 // pred_check_branch
    %1708 = sbr.rel (0) target = $region53
  $region52: #{actor_critic_forward.1} parent=0 // pred_region
    _
  $region53: #{actor_critic_forward.1} parent=0 // pred_fallthru
    _

</llo_original>
